<compile_context>
chip_gen: v7x
topology: tpu7x:2x2x1
jax: 0.10.0
libtpu: 0.0.40
codegen_flags: <defaults>
</compile_context>

<pallas_src>
import jax
import jax.numpy as jnp
from jax.experimental import pallas as pl
from jax.experimental.pallas import tpu as pltpu


def _make_attn_pool_kernel(num_real_tokens):
    """Kernel body processing `tb` batch elements per grid step."""
    inv_hw = 1.0 / float(num_real_tokens)

    def kernel(xs_ref, pos0_ref, posr_ref, negm_ref, seg_ref, segt_ref,
               wq_ref, bq_ref, wkv_ref, bkv_ref, wc_ref, bc_ref, out_ref):
        f32 = jnp.float32
        bf16 = jnp.bfloat16
        tb, hwp, c = xs_ref.shape                  # static block shape
        h = seg_ref.shape[1]                       # num_heads

        xs = xs_ref[...]                                            # (tb,hwp,c) bf16

        # Token 0 = mean of the REAL spatial tokens (padded rows are zero),
        # f32 accumulation, then + positional embedding row 0.
        mean_tok = jnp.sum(xs, axis=1, dtype=f32) * inv_hw + pos0_ref[...]   # (tb,c) f32
        hw_tok = xs + posr_ref[...][None, :, :]                              # (tb,hwp,c) bf16
        mean_bf = mean_tok.astype(bf16)

        # ---- fused projections: bf16 MXU operands, f32 accumulation ----
        # Query (1/sqrt(head_dim) already folded into Wq/bq in the wrapper).
        q = jnp.dot(mean_bf, wq_ref[...], preferred_element_type=f32) + bq_ref[...]      # (tb,c)
        # K/V of the mean token.
        kv0 = jnp.dot(mean_bf, wkv_ref[...], preferred_element_type=f32) + bkv_ref[...]  # (tb,2c)
        # K/V of all spatial tokens: one big (tb*hwp, c) @ (c, 2c) matmul.
        kvh = jnp.dot(hw_tok.reshape(tb * hwp, c), wkv_ref[...],
                      preferred_element_type=f32) + bkv_ref[...]                         # (tb*hwp,2c)

        k0, v0 = kv0[:, :c], kv0[:, c:]                              # (tb,c)
        kh = kvh[:, :c].reshape(tb, hwp, c)                          # (tb,hwp,c)
        vh = kvh[:, c:].reshape(tb, hwp, c)                          # (tb,hwp,c)

        seg = seg_ref[...]                                           # (c,h) bf16 one-hot
        segt = segt_ref[...]                                         # (h,c) bf16 one-hot

        # ---- per-head scores (query length 1): segmented lane sums on MXU ----
        s0 = jnp.dot((q * k0).astype(bf16), seg, preferred_element_type=f32)       # (tb,h)
        prod = (q[:, None, :] * kh).astype(bf16).reshape(tb * hwp, c)
        sh = jnp.dot(prod, seg, preferred_element_type=f32).reshape(tb, hwp, h)    # (tb,hwp,h)
        sh = sh + negm_ref[...][None, :, :]        # mask padded key tokens (-1e30)

        # ---- softmax over L = 1 + HW keys (f32 VPU/EUP math) ----
        m = jnp.maximum(s0, jnp.max(sh, axis=1))                     # (tb,h)
        e0 = jnp.exp(s0 - m)
        eh = jnp.exp(sh - m[:, None, :])
        inv = pl.reciprocal(e0 + jnp.sum(eh, axis=1), approx=False)  # exact, EUP
        p0 = e0 * inv
        ph = eh * inv[:, None, :]

        # ---- weighted value sum; expand head probs to channels via segT ----
        p0c = jnp.dot(p0.astype(bf16), segt, preferred_element_type=f32)            # (tb,c)
        phc = jnp.dot(ph.astype(bf16).reshape(tb * hwp, h), segt,
                      preferred_element_type=f32).reshape(tb, hwp, c)               # (tb,hwp,c)
        attn = p0c * v0 + jnp.sum(phc * vh, axis=1)                                  # (tb,c) f32

        # ---- output projection (lane-dense, padded out_dim) ----
        out = jnp.dot(attn.astype(bf16), wc_ref[...],
                      preferred_element_type=f32) + bc_ref[...]                      # (tb,outp)
        out_ref[...] = out.astype(out_ref.dtype)

    return kernel


def _round_up(x, m):
    return ((x + m - 1) // m) * m


def attention_pool_2d(x, params, num_heads):
    """x: (N, C, H, W) float32. Returns (N, output_dim) float32."""
    N, C, Hs, Ws = x.shape
    HW = Hs * Ws
    L = HW + 1
    assert C % num_heads == 0, "embed_dim must be divisible by num_heads"
    head_dim = C // num_heads
    pos = params["pos"]
    assert pos.shape == (L, C)
    out_dim = params["wc"].shape[0]

    f32, bf16 = jnp.float32, jnp.bfloat16

    # ---- padded geometry: bf16-pack-aligned token axis, lane-dense output ----
    HWp = _round_up(HW, 16)          # multiple of 16 -> bf16 reshapes are layout no-ops
    OUTp = _round_up(out_dim, 128)   # lane-dense output stores (no vst.msk)

    # ---- constants / weights (bf16 MXU operands; biases & pos0 stay f32) ----
    scale = head_dim ** -0.5
    wq_s = (params["wq"].T * scale).astype(bf16)                                   # (C,C)
    bq_s = (params["bq"] * scale)[None, :].astype(f32)                             # (1,C)
    w_kv = jnp.concatenate([params["wk"].T, params["wv"].T], axis=1).astype(bf16)  # (C,2C)
    b_kv = jnp.concatenate([params["bk"], params["bv"]])[None, :].astype(f32)      # (1,2C)
    w_c = jnp.zeros((C, OUTp), bf16).at[:, :out_dim].set(params["wc"].T.astype(bf16))
    b_c = jnp.zeros((1, OUTp), f32).at[0, :out_dim].set(params["bc"].astype(f32))
    pos0 = pos[:1].astype(f32)                                                     # (1,C)
    pos_r = jnp.zeros((HWp, C), bf16).at[:HW].set(pos[1:].astype(bf16))            # (HWp,C)
    # additive softmax mask for padded key tokens
    neg_m = jnp.where(jnp.arange(HWp)[:, None] < HW, 0.0, -1e30).astype(f32)       # (HWp,1)
    # one-hot head-segment matrices (channel // head_dim -> head), precomputed
    hidx = jnp.arange(C) // head_dim
    seg = (hidx[:, None] == jnp.arange(num_heads)[None, :]).astype(bf16)           # (C,H)
    seg_t = (jnp.arange(num_heads)[:, None] == hidx[None, :]).astype(bf16)         # (H,C)

    # ---- generation-aware VMEM budget and batch tile ----
    def nbytes(a):
        return int(a.size) * a.dtype.itemsize

    try:
        cap = int(pltpu.get_tpu_info().vmem_capacity_bytes)
    except Exception:
        cap = 128 * 1024 * 1024
    budget = cap - max(8 << 20, cap // 8)        # ~112 MiB on v5e/v6e, ~56 MiB per TC on v7x
    fixed = sum(nbytes(a) for a in (wq_s, bq_s, w_kv, b_kv, w_c, b_c,
                                    pos0, pos_r, neg_m, seg, seg_t))   # single-buffered
    # per-batch-element live footprint estimate: xs dbl-buf (4B) + hw_tok bf16 (2B)
    # + kvh f32 (8B) + prod bf16 (2B) + phc f32 (4B) per (HWp, C) element.
    per_elem = 20 * HWp * C + 8 * OUTp
    tb_cap = 16 if cap <= (64 << 20) else 32     # v7x: size to the per-TC 64 MiB budget
    tb = 8
    for t in (16, 24, 32):
        if t <= tb_cap and fixed + t * per_elem + (8 << 20) <= budget:
            tb = t
    while tb > 8 and pl.cdiv(N, tb) < 2:         # keep >=2 grid steps (megacore / pipelining)
        tb -= 8
    Np = _round_up(N, tb)

    # ---- activation layout: NCHW -> token-major, bf16 cast fused into it ----
    xs = x.reshape(N, C, HW).transpose(0, 2, 1).astype(bf16)
    xs = jnp.pad(xs, ((0, Np - N), (0, HWp - HW), (0, 0)))            # (Np, HWp, C)

    def const_spec(shape):
        idx = lambda b: (0,) * len(shape)
        try:   # single-buffer resident constants (halves resident weight VMEM)
            return pl.BlockSpec(shape, idx, pipeline_mode=pl.Buffered(1))
        except Exception:
            return pl.BlockSpec(shape, idx)

    out = pl.pallas_call(
        _make_attn_pool_kernel(HW),
        out_shape=jax.ShapeDtypeStruct((Np, OUTp), f32),
        grid_spec=pltpu.PrefetchScalarGridSpec(
            num_scalar_prefetch=0,
            grid=(Np // tb,),
            in_specs=[
                pl.BlockSpec((tb, HWp, C), lambda b: (b, 0, 0)),  # spatial tokens (bf16)
                const_spec((1, C)),            # pos[0]            (f32)
                const_spec((HWp, C)),          # pos[1:], padded   (bf16)
                const_spec((HWp, 1)),          # padded-token softmax mask (f32)
                const_spec((C, num_heads)),    # seg   (bf16)
                const_spec((num_heads, C)),    # segT  (bf16)
                const_spec((C, C)),            # Wq^T * scale      (bf16)
                const_spec((1, C)),            # bq * scale        (f32)
                const_spec((C, 2 * C)),        # [Wk^T | Wv^T]     (bf16)
                const_spec((1, 2 * C)),        # [bk | bv]         (f32)
                const_spec((C, OUTp)),         # Wc^T, padded      (bf16)
                const_spec((1, OUTp)),         # bc, padded        (f32)
            ],
            out_specs=pl.BlockSpec((tb, OUTp), lambda b: (b, 0)),
        ),
        compiler_params=pltpu.CompilerParams(
            dimension_semantics=("parallel",),
            vmem_limit_bytes=int(budget),
        ),
    )(xs, pos0, pos_r, neg_m, seg, seg_t, wq_s, bq_s, w_kv, b_kv, w_c, b_c)

    return out[:N, :out_dim]


def _reference(x, params, num_heads):
    """Pure-JAX f32 reference replicating F.multi_head_attention_forward."""
    N, C, H, W = x.shape
    HW = H * W
    head_dim = C // num_heads
    xs = x.reshape(N, C, HW).transpose(0, 2, 1)
    full = jnp.concatenate([jnp.mean(xs, axis=1, keepdims=True), xs], axis=1)
    full = full + params["pos"][None, :, :]
    q_tok = full[:, :1, :]

    q = q_tok @ params["wq"].T + params["bq"]
    k = full @ params["wk"].T + params["bk"]
    v = full @ params["wv"].T + params["bv"]
    q = q.reshape(N, 1, num_heads, head_dim) * (head_dim ** -0.5)
    k = k.reshape(N, -1, num_heads, head_dim)
    v = v.reshape(N, -1, num_heads, head_dim)
    s = jnp.einsum("nqhd,nkhd->nhqk", q, k)
    p = jax.nn.softmax(s, axis=-1)
    o = jnp.einsum("nhqk,nkhd->nqhd", p, v).reshape(N, 1, C)
    o = o @ params["wc"].T + params["bc"]
    return o[:, 0, :]


if __name__ == "__main__":
    # Small shapes chosen to exercise every padding path:
    #   HW = 25 (not a multiple of 8/16)  -> token padding + softmax mask
    #   output_dim = 16 (< 128)           -> lane padding of the output
    #   batch = 12 (not a multiple of 8)  -> batch padding to the tile
    spacial_dim = 5
    embed_dim = 32
    num_heads = 4
    output_dim = 16
    batch = 12
    L = spacial_dim ** 2 + 1

    key = jax.random.PRNGKey(0)
    keys = jax.random.split(key, 10)

    params = {
        "pos": jax.random.normal(keys[0], (L, embed_dim), jnp.float32) / embed_dim ** 0.5,
        "wq": jax.random.normal(keys[1], (embed_dim, embed_dim), jnp.float32) * 0.05,
        "bq": jax.random.normal(keys[2], (embed_dim,), jnp.float32) * 0.05,
        "wk": jax.random.normal(keys[3], (embed_dim, embed_dim), jnp.float32) * 0.05,
        "bk": jax.random.normal(keys[4], (embed_dim,), jnp.float32) * 0.05,
        "wv": jax.random.normal(keys[5], (embed_dim, embed_dim), jnp.float32) * 0.05,
        "bv": jax.random.normal(keys[6], (embed_dim,), jnp.float32) * 0.05,
        "wc": jax.random.normal(keys[7], (output_dim, embed_dim), jnp.float32) * 0.05,
        "bc": jax.random.normal(keys[8], (output_dim,), jnp.float32) * 0.05,
    }

    x = jax.random.normal(keys[9], (batch, embed_dim, spacial_dim, spacial_dim),
                          jnp.float32)

    out = jax.block_until_ready(attention_pool_2d(x, params, num_heads))
    ref = _reference(x, params, num_heads)

    assert out.shape == (batch, output_dim)
    # bf16 MXU operands are a deliberate perf choice -> bf16-level tolerance
    # versus the f32 reference.
    max_err = float(jnp.max(jnp.abs(out - ref)))
    assert jnp.allclose(out, ref, atol=1e-2, rtol=5e-2), f"mismatch vs reference: {max_err}"

    print("KERNEL_OK")
</pallas_src>

<mosaic_0001>
module attributes {stable_mosaic.version = 11 : i64} {
  func.func @kernel(%arg0: i32, %arg1: memref<8x32x32xbf16, #tpu.memory_space<vmem>>, %arg2: memref<1x32xf32, #tpu.memory_space<vmem>>, %arg3: memref<32x32xbf16, #tpu.memory_space<vmem>>, %arg4: memref<32x1xf32, #tpu.memory_space<vmem>>, %arg5: memref<32x4xbf16, #tpu.memory_space<vmem>>, %arg6: memref<4x32xbf16, #tpu.memory_space<vmem>>, %arg7: memref<32x32xbf16, #tpu.memory_space<vmem>>, %arg8: memref<1x32xf32, #tpu.memory_space<vmem>>, %arg9: memref<32x64xbf16, #tpu.memory_space<vmem>>, %arg10: memref<1x64xf32, #tpu.memory_space<vmem>>, %arg11: memref<32x128xbf16, #tpu.memory_space<vmem>>, %arg12: memref<1x128xf32, #tpu.memory_space<vmem>>, %arg13: memref<8x128xf32, #tpu.memory_space<vmem>>) attributes {dimension_semantics = [#tpu.dimension_semantics<parallel>], iteration_bounds = array<i64: 2>, scalar_prefetch = 0 : i64, scratch_operands = 0 : i64, tpu.core_type = #tpu.core_type<tc>, window_params = [{transform_indices = @transform_0, window_bounds = array<i64: 8, 32, 32>}, {pipeline_mode = #tpu.pipeline_mode<synchronous>, transform_indices = @transform_1, window_bounds = array<i64: 1, 32>}, {pipeline_mode = #tpu.pipeline_mode<synchronous>, transform_indices = @transform_2, window_bounds = array<i64: 32, 32>}, {pipeline_mode = #tpu.pipeline_mode<synchronous>, transform_indices = @transform_3, window_bounds = array<i64: 32, 1>}, {pipeline_mode = #tpu.pipeline_mode<synchronous>, transform_indices = @transform_4, window_bounds = array<i64: 32, 4>}, {pipeline_mode = #tpu.pipeline_mode<synchronous>, transform_indices = @transform_5, window_bounds = array<i64: 4, 32>}, {pipeline_mode = #tpu.pipeline_mode<synchronous>, transform_indices = @transform_6, window_bounds = array<i64: 32, 32>}, {pipeline_mode = #tpu.pipeline_mode<synchronous>, transform_indices = @transform_7, window_bounds = array<i64: 1, 32>}, {pipeline_mode = #tpu.pipeline_mode<synchronous>, transform_indices = @transform_8, window_bounds = array<i64: 32, 64>}, {pipeline_mode = #tpu.pipeline_mode<synchronous>, transform_indices = @transform_9, window_bounds = array<i64: 1, 64>}, {pipeline_mode = #tpu.pipeline_mode<synchronous>, transform_indices = @transform_10, window_bounds = array<i64: 32, 128>}, {pipeline_mode = #tpu.pipeline_mode<synchronous>, transform_indices = @transform_11, window_bounds = array<i64: 1, 128>}, {transform_indices = @transform_12, window_bounds = array<i64: 8, 128>}]} {
    %c0 = arith.constant 0 : index
    %c0_0 = arith.constant 0 : index
    %c0_1 = arith.constant 0 : index
    %0 = vector.load %arg1[%c0, %c0_0, %c0_1] : memref<8x32x32xbf16, #tpu.memory_space<vmem>>, vector<8x32x32xbf16>
    %1 = arith.extf %0 : vector<8x32x32xbf16> to vector<8x32x32xf32>
    %cst = arith.constant dense<0.000000e+00> : vector<8x32xf32>
    %2 = vector.multi_reduction <add>, %1, %cst [1] : vector<8x32x32xf32> to vector<8x32xf32>
    %cst_2 = arith.constant 4.000000e-02 : f32
    %3 = vector.broadcast %cst_2 : f32 to vector<8x32xf32>
    %4 = arith.mulf %2, %3 : vector<8x32xf32>
    %c0_3 = arith.constant 0 : index
    %c0_4 = arith.constant 0 : index
    %5 = vector.load %arg2[%c0_3, %c0_4] : memref<1x32xf32, #tpu.memory_space<vmem>>, vector<1x32xf32>
    %6 = vector.broadcast %5 : vector<1x32xf32> to vector<8x32xf32>
    %7 = arith.addf %4, %6 : vector<8x32xf32>
    %c0_5 = arith.constant 0 : index
    %c0_6 = arith.constant 0 : index
    %8 = vector.load %arg3[%c0_5, %c0_6] : memref<32x32xbf16, #tpu.memory_space<vmem>>, vector<32x32xbf16>
    %9 = vector.shape_cast %8 : vector<32x32xbf16> to vector<1x32x32xbf16>
    %10 = vector.broadcast %9 : vector<1x32x32xbf16> to vector<8x32x32xbf16>
    %11 = arith.addf %0, %10 : vector<8x32x32xbf16>
    %12 = arith.truncf %7 : vector<8x32xf32> to vector<8x32xbf16>
    %c0_7 = arith.constant 0 : index
    %c0_8 = arith.constant 0 : index
    %13 = vector.load %arg7[%c0_7, %c0_8] : memref<32x32xbf16, #tpu.memory_space<vmem>>, vector<32x32xbf16>
    %cst_9 = arith.constant dense<0.000000e+00> : vector<8x32xf32>
    %14 = tpu.matmul %12, %13, %cst_9 {dimension_numbers = #tpu.dot_dimension_numbers<[1], [0], [0], [1], [0, 0, 1, 1], [], []>} : vector<8x32xbf16>, vector<32x32xbf16>, vector<8x32xf32> -> vector<8x32xf32>
    %c0_10 = arith.constant 0 : index
    %c0_11 = arith.constant 0 : index
    %15 = vector.load %arg8[%c0_10, %c0_11] : memref<1x32xf32, #tpu.memory_space<vmem>>, vector<1x32xf32>
    %16 = vector.broadcast %15 : vector<1x32xf32> to vector<8x32xf32>
    %17 = arith.addf %14, %16 : vector<8x32xf32>
    %c0_12 = arith.constant 0 : index
    %c0_13 = arith.constant 0 : index
    %18 = vector.load %arg9[%c0_12, %c0_13] : memref<32x64xbf16, #tpu.memory_space<vmem>>, vector<32x64xbf16>
    %cst_14 = arith.constant dense<0.000000e+00> : vector<8x64xf32>
    %19 = tpu.matmul %12, %18, %cst_14 {dimension_numbers = #tpu.dot_dimension_numbers<[1], [0], [0], [1], [0, 0, 1, 1], [], []>} : vector<8x32xbf16>, vector<32x64xbf16>, vector<8x64xf32> -> vector<8x64xf32>
    %c0_15 = arith.constant 0 : index
    %c0_16 = arith.constant 0 : index
    %20 = vector.load %arg10[%c0_15, %c0_16] : memref<1x64xf32, #tpu.memory_space<vmem>>, vector<1x64xf32>
    %21 = vector.broadcast %20 : vector<1x64xf32> to vector<8x64xf32>
    %22 = arith.addf %19, %21 : vector<8x64xf32>
    %23 = vector.shape_cast %11 : vector<8x32x32xbf16> to vector<256x32xbf16>
    %c0_17 = arith.constant 0 : index
    %c0_18 = arith.constant 0 : index
    %24 = vector.load %arg9[%c0_17, %c0_18] : memref<32x64xbf16, #tpu.memory_space<vmem>>, vector<32x64xbf16>
    %cst_19 = arith.constant dense<0.000000e+00> : vector<256x64xf32>
    %25 = tpu.matmul %23, %24, %cst_19 {dimension_numbers = #tpu.dot_dimension_numbers<[1], [0], [0], [1], [0, 0, 1, 1], [], []>} : vector<256x32xbf16>, vector<32x64xbf16>, vector<256x64xf32> -> vector<256x64xf32>
    %c0_20 = arith.constant 0 : index
    %c0_21 = arith.constant 0 : index
    %26 = vector.load %arg10[%c0_20, %c0_21] : memref<1x64xf32, #tpu.memory_space<vmem>>, vector<1x64xf32>
    %27 = vector.broadcast %26 : vector<1x64xf32> to vector<256x64xf32>
    %28 = arith.addf %25, %27 : vector<256x64xf32>
    %29 = vector.extract_strided_slice %22 {offsets = [0, 0], sizes = [8, 32], strides = [1, 1]} : vector<8x64xf32> to vector<8x32xf32>
    %30 = vector.extract_strided_slice %22 {offsets = [0, 32], sizes = [8, 32], strides = [1, 1]} : vector<8x64xf32> to vector<8x32xf32>
    %31 = vector.extract_strided_slice %28 {offsets = [0, 0], sizes = [256, 32], strides = [1, 1]} : vector<256x64xf32> to vector<256x32xf32>
    %32 = vector.shape_cast %31 : vector<256x32xf32> to vector<8x32x32xf32>
    %33 = vector.extract_strided_slice %28 {offsets = [0, 32], sizes = [256, 32], strides = [1, 1]} : vector<256x64xf32> to vector<256x32xf32>
    %34 = vector.shape_cast %33 : vector<256x32xf32> to vector<8x32x32xf32>
    %c0_22 = arith.constant 0 : index
    %c0_23 = arith.constant 0 : index
    %35 = vector.load %arg5[%c0_22, %c0_23] : memref<32x4xbf16, #tpu.memory_space<vmem>>, vector<32x4xbf16>
    %c0_24 = arith.constant 0 : index
    %c0_25 = arith.constant 0 : index
    %36 = vector.load %arg6[%c0_24, %c0_25] : memref<4x32xbf16, #tpu.memory_space<vmem>>, vector<4x32xbf16>
    %37 = arith.mulf %17, %29 : vector<8x32xf32>
    %38 = arith.truncf %37 : vector<8x32xf32> to vector<8x32xbf16>
    %cst_26 = arith.constant dense<0.000000e+00> : vector<8x4xf32>
    %39 = tpu.matmul %38, %35, %cst_26 {dimension_numbers = #tpu.dot_dimension_numbers<[1], [0], [0], [1], [0, 0, 1, 1], [], []>} : vector<8x32xbf16>, vector<32x4xbf16>, vector<8x4xf32> -> vector<8x4xf32>
    %40 = vector.shape_cast %17 : vector<8x32xf32> to vector<8x1x32xf32>
    %41 = vector.broadcast %40 : vector<8x1x32xf32> to vector<8x32x32xf32>
    %42 = arith.mulf %41, %32 : vector<8x32x32xf32>
    %43 = arith.truncf %42 : vector<8x32x32xf32> to vector<8x32x32xbf16>
    %44 = vector.shape_cast %43 : vector<8x32x32xbf16> to vector<256x32xbf16>
    %cst_27 = arith.constant dense<0.000000e+00> : vector<256x4xf32>
    %45 = tpu.matmul %44, %35, %cst_27 {dimension_numbers = #tpu.dot_dimension_numbers<[1], [0], [0], [1], [0, 0, 1, 1], [], []>} : vector<256x32xbf16>, vector<32x4xbf16>, vector<256x4xf32> -> vector<256x4xf32>
    %46 = vector.shape_cast %45 : vector<256x4xf32> to vector<8x32x4xf32>
    %c0_28 = arith.constant 0 : index
    %c0_29 = arith.constant 0 : index
    %47 = vector.load %arg4[%c0_28, %c0_29] : memref<32x1xf32, #tpu.memory_space<vmem>>, vector<32x1xf32>
    %48 = vector.shape_cast %47 : vector<32x1xf32> to vector<1x32x1xf32>
    %49 = vector.broadcast %48 : vector<1x32x1xf32> to vector<8x32x4xf32>
    %50 = arith.addf %46, %49 : vector<8x32x4xf32>
    %cst_30 = arith.constant dense<0xFF800000> : vector<8x4xf32>
    %51 = vector.multi_reduction <maximumf>, %50, %cst_30 [1] : vector<8x32x4xf32> to vector<8x4xf32>
    %52 = arith.maximumf %39, %51 : vector<8x4xf32>
    %53 = arith.subf %39, %52 : vector<8x4xf32>
    %54 = math.exp %53 : vector<8x4xf32>
    %55 = vector.shape_cast %52 : vector<8x4xf32> to vector<8x1x4xf32>
    %56 = vector.broadcast %55 : vector<8x1x4xf32> to vector<8x32x4xf32>
    %57 = arith.subf %50, %56 : vector<8x32x4xf32>
    %58 = math.exp %57 : vector<8x32x4xf32>
    %cst_31 = arith.constant dense<0.000000e+00> : vector<8x4xf32>
    %59 = vector.multi_reduction <add>, %58, %cst_31 [1] : vector<8x32x4xf32> to vector<8x4xf32>
    %60 = arith.addf %54, %59 : vector<8x4xf32>
    %61 = tpu.reciprocal %60 : vector<8x4xf32> -> vector<8x4xf32>
    %62 = arith.mulf %54, %61 : vector<8x4xf32>
    %63 = vector.shape_cast %61 : vector<8x4xf32> to vector<8x1x4xf32>
    %64 = vector.broadcast %63 : vector<8x1x4xf32> to vector<8x32x4xf32>
    %65 = arith.mulf %58, %64 : vector<8x32x4xf32>
    %66 = arith.truncf %62 : vector<8x4xf32> to vector<8x4xbf16>
    %cst_32 = arith.constant dense<0.000000e+00> : vector<8x32xf32>
    %67 = tpu.matmul %66, %36, %cst_32 {dimension_numbers = #tpu.dot_dimension_numbers<[1], [0], [0], [1], [0, 0, 1, 1], [], []>} : vector<8x4xbf16>, vector<4x32xbf16>, vector<8x32xf32> -> vector<8x32xf32>
    %68 = arith.truncf %65 : vector<8x32x4xf32> to vector<8x32x4xbf16>
    %69 = vector.shape_cast %68 : vector<8x32x4xbf16> to vector<256x4xbf16>
    %cst_33 = arith.constant dense<0.000000e+00> : vector<256x32xf32>
    %70 = tpu.matmul %69, %36, %cst_33 {dimension_numbers = #tpu.dot_dimension_numbers<[1], [0], [0], [1], [0, 0, 1, 1], [], []>} : vector<256x4xbf16>, vector<4x32xbf16>, vector<256x32xf32> -> vector<256x32xf32>
    %71 = vector.shape_cast %70 : vector<256x32xf32> to vector<8x32x32xf32>
    %72 = arith.mulf %67, %30 : vector<8x32xf32>
    %73 = arith.mulf %71, %34 : vector<8x32x32xf32>
    %cst_34 = arith.constant dense<0.000000e+00> : vector<8x32xf32>
    %74 = vector.multi_reduction <add>, %73, %cst_34 [1] : vector<8x32x32xf32> to vector<8x32xf32>
    %75 = arith.addf %72, %74 : vector<8x32xf32>
    %76 = arith.truncf %75 : vector<8x32xf32> to vector<8x32xbf16>
    %c0_35 = arith.constant 0 : index
    %c0_36 = arith.constant 0 : index
    %77 = vector.load %arg11[%c0_35, %c0_36] : memref<32x128xbf16, #tpu.memory_space<vmem>>, vector<32x128xbf16>
    %cst_37 = arith.constant dense<0.000000e+00> : vector<8x128xf32>
    %78 = tpu.matmul %76, %77, %cst_37 {dimension_numbers = #tpu.dot_dimension_numbers<[1], [0], [0], [1], [0, 0, 1, 1], [], []>} : vector<8x32xbf16>, vector<32x128xbf16>, vector<8x128xf32> -> vector<8x128xf32>
    %c0_38 = arith.constant 0 : index
    %c0_39 = arith.constant 0 : index
    %79 = vector.load %arg12[%c0_38, %c0_39] : memref<1x128xf32, #tpu.memory_space<vmem>>, vector<1x128xf32>
    %80 = vector.broadcast %79 : vector<1x128xf32> to vector<8x128xf32>
    %81 = arith.addf %78, %80 : vector<8x128xf32>
    %c0_40 = arith.constant 0 : index
    %c0_41 = arith.constant 0 : index
    %82 = vector.load %arg13[%c0_40, %c0_41] : memref<8x128xf32, #tpu.memory_space<vmem>>, vector<8x128xf32>
    tpu.vector_store %arg13[%c0_40, %c0_41], %81 {strides = array<i32>} : memref<8x128xf32, #tpu.memory_space<vmem>>, vector<8x128xf32>,
    return
  }
  func.func @transform_0(%arg0: i32) -> (i32, i32, i32) {
    %c0_i32 = arith.constant 0 : i32
    %c0_i32_0 = arith.constant 0 : i32
    %c0_i32_1 = arith.constant 0 : i32
    return %arg0, %c0_i32, %c0_i32_0 : i32, i32, i32
  }
  func.func @transform_1(%arg0: i32) -> (i32, i32) {
    %c0_i32 = arith.constant 0 : i32
    %c0_i32_0 = arith.constant 0 : i32
    %c0_i32_1 = arith.constant 0 : i32
    return %c0_i32, %c0_i32_0 : i32, i32
  }
  func.func @transform_2(%arg0: i32) -> (i32, i32) {
    %c0_i32 = arith.constant 0 : i32
    %c0_i32_0 = arith.constant 0 : i32
    %c0_i32_1 = arith.constant 0 : i32
    return %c0_i32, %c0_i32_0 : i32, i32
  }
  func.func @transform_3(%arg0: i32) -> (i32, i32) {
    %c0_i32 = arith.constant 0 : i32
    %c0_i32_0 = arith.constant 0 : i32
    %c0_i32_1 = arith.constant 0 : i32
    return %c0_i32, %c0_i32_0 : i32, i32
  }
  func.func @transform_4(%arg0: i32) -> (i32, i32) {
    %c0_i32 = arith.constant 0 : i32
    %c0_i32_0 = arith.constant 0 : i32
    %c0_i32_1 = arith.constant 0 : i32
    return %c0_i32, %c0_i32_0 : i32, i32
  }
  func.func @transform_5(%arg0: i32) -> (i32, i32) {
    %c0_i32 = arith.constant 0 : i32
    %c0_i32_0 = arith.constant 0 : i32
    %c0_i32_1 = arith.constant 0 : i32
    return %c0_i32, %c0_i32_0 : i32, i32
  }
  func.func @transform_6(%arg0: i32) -> (i32, i32) {
    %c0_i32 = arith.constant 0 : i32
    %c0_i32_0 = arith.constant 0 : i32
    %c0_i32_1 = arith.constant 0 : i32
    return %c0_i32, %c0_i32_0 : i32, i32
  }
  func.func @transform_7(%arg0: i32) -> (i32, i32) {
    %c0_i32 = arith.constant 0 : i32
    %c0_i32_0 = arith.constant 0 : i32
    %c0_i32_1 = arith.constant 0 : i32
    return %c0_i32, %c0_i32_0 : i32, i32
  }
  func.func @transform_8(%arg0: i32) -> (i32, i32) {
    %c0_i32 = arith.constant 0 : i32
    %c0_i32_0 = arith.constant 0 : i32
    %c0_i32_1 = arith.constant 0 : i32
    return %c0_i32, %c0_i32_0 : i32, i32
  }
  func.func @transform_9(%arg0: i32) -> (i32, i32) {
    %c0_i32 = arith.constant 0 : i32
    %c0_i32_0 = arith.constant 0 : i32
    %c0_i32_1 = arith.constant 0 : i32
    return %c0_i32, %c0_i32_0 : i32, i32
  }
  func.func @transform_10(%arg0: i32) -> (i32, i32) {
    %c0_i32 = arith.constant 0 : i32
    %c0_i32_0 = arith.constant 0 : i32
    %c0_i32_1 = arith.constant 0 : i32
    return %c0_i32, %c0_i32_0 : i32, i32
  }
  func.func @transform_11(%arg0: i32) -> (i32, i32) {
    %c0_i32 = arith.constant 0 : i32
    %c0_i32_0 = arith.constant 0 : i32
    %c0_i32_1 = arith.constant 0 : i32
    return %c0_i32, %c0_i32_0 : i32, i32
  }
  func.func @transform_12(%arg0: i32) -> (i32, i32) {
    %c0_i32 = arith.constant 0 : i32
    %c0_i32_0 = arith.constant 0 : i32
    return %arg0, %c0_i32 : i32, i32
  }
}

</mosaic_0001>

<llo_original>
// kernel: tpu_custom_call.1
$region0: #{tpu_custom_call.1}
  #allocation0 [shape = 'u32[]', space=smem, size = 0x4, offset = 0x4, fixed_abs, tag = 'smem constant byte address 0x4 - core index']
  #allocation1 [shape = 'u32[144,128]{1,0:T(1,128)}', space=vmem, size = 0x12000, scoped, tag = 'internal scratch']
  %s0 = inlined_call_operand.hbm [shape: bf16[16,32,32], index: 0, kind: input, shape index: {}]
  %s1 = inlined_call_operand.hbm [shape: f32[1,32], index: 1, kind: input, shape index: {}]
  %s2 = inlined_call_operand.hbm [shape: bf16[32,32], index: 2, kind: input, shape index: {}]
  %s3 = inlined_call_operand.hbm [shape: f32[32,1], index: 3, kind: input, shape index: {}]
  %s4 = inlined_call_operand.hbm [shape: bf16[32,4], index: 4, kind: input, shape index: {}]
  %s5 = inlined_call_operand.hbm [shape: bf16[4,32], index: 5, kind: input, shape index: {}]
  %s6 = inlined_call_operand.hbm [shape: bf16[32,32], index: 6, kind: input, shape index: {}]
  %s7 = inlined_call_operand.hbm [shape: f32[1,32], index: 7, kind: input, shape index: {}]
  %s8 = inlined_call_operand.hbm [shape: bf16[32,64], index: 8, kind: input, shape index: {}]
  %s9 = inlined_call_operand.hbm [shape: f32[1,64], index: 9, kind: input, shape index: {}]
  %s10 = inlined_call_operand.hbm [shape: bf16[32,128], index: 10, kind: input, shape index: {}]
  %s11 = inlined_call_operand.hbm [shape: f32[1,128], index: 11, kind: input, shape index: {}]
  %s12 = inlined_call_operand.hbm [shape: f32[16,128], index: 12, kind: output, shape index: {}]
  %s13 = sld [smem:[#allocation0]]
  $region129: #{tpu_custom_call.1} parent=0
    _
  %s15 = ssub.s32 1, %s13
  %s16 = scalar_select 0, %s15, %s13
  $region1: #{tpu_custom_call.1} parent=0
    #allocation2 [shape = 'u8[131072]{0}', space=vmem, size = 0x20000, scoped, tag = 'input window, operand 0']
    #allocation3 [shape = 's32[2]{0}', space=sflag, size = 0x8, scoped, tag = 'scoped memory for tpu_custom_call.1']
    #allocation4 [shape = 's32[2]{0}', space=sflag, size = 0x8, scoped, tag = 'scoped memory for tpu_custom_call.1']
    #allocation5 [shape = 'u8[512]{0}', space=vmem, size = 0x400, scoped, tag = 'input window, operand 1, single buffered']
    #allocation6 [shape = 's32[1]{0}', space=sflag, size = 0x4, scoped, tag = 'scoped memory for tpu_custom_call.1']
    #allocation7 [shape = 'u8[8192]{0}', space=vmem, size = 0x2000, scoped, tag = 'input window, operand 2, single buffered']
    #allocation8 [shape = 'u8[16384]{0}', space=vmem, size = 0x4000, scoped, tag = 'input window, operand 3, single buffered']
    #allocation9 [shape = 's32[1]{0}', space=sflag, size = 0x4, scoped, tag = 'scoped memory for tpu_custom_call.1']
    #allocation10 [shape = 'u8[8192]{0}', space=vmem, size = 0x2000, scoped, tag = 'input window, operand 4, single buffered']
    #allocation11 [shape = 'u8[1024]{0}', space=vmem, size = 0x400, scoped, tag = 'input window, operand 5, single buffered']
    #allocation12 [shape = 's32[1]{0}', space=sflag, size = 0x4, scoped, tag = 'scoped memory for tpu_custom_call.1']
    #allocation13 [shape = 'u8[8192]{0}', space=vmem, size = 0x2000, scoped, tag = 'input window, operand 6, single buffered']
    #allocation14 [shape = 'u8[512]{0}', space=vmem, size = 0x400, scoped, tag = 'input window, operand 7, single buffered']
    #allocation15 [shape = 's32[1]{0}', space=sflag, size = 0x4, scoped, tag = 'scoped memory for tpu_custom_call.1']
    #allocation16 [shape = 'u8[8192]{0}', space=vmem, size = 0x2000, scoped, tag = 'input window, operand 8, single buffered']
    #allocation17 [shape = 'u8[512]{0}', space=vmem, size = 0x400, scoped, tag = 'input window, operand 9, single buffered']
    #allocation18 [shape = 's32[1]{0}', space=sflag, size = 0x4, scoped, tag = 'scoped memory for tpu_custom_call.1']
    #allocation19 [shape = 'u8[8192]{0}', space=vmem, size = 0x2000, scoped, tag = 'input window, operand 10, single buffered']
    #allocation20 [shape = 'u8[512]{0}', space=vmem, size = 0x400, scoped, tag = 'input window, operand 11, single buffered']
    #allocation21 [shape = 's32[1]{0}', space=sflag, size = 0x4, scoped, tag = 'scoped memory for tpu_custom_call.1']
    #allocation22 [shape = 'u8[8192]{0}', space=vmem, size = 0x2000, scoped, tag = 'output window, operand 0']
    %17 = vsyncpa [#allocation3], 0
    %s18 = scalar_lea.sflag [#allocation3], 1
    %19 = vsyncpa %s18, 0
    %20 = vsyncpa [#allocation6], 0
    %21 = vsyncpa [#allocation9], 0
    %22 = vsyncpa [#allocation12], 0
    %23 = vsyncpa [#allocation15], 0
    %24 = vsyncpa [#allocation18], 0
    %25 = vsyncpa [#allocation21], 0
    %26 = vsyncpa [#allocation4], 0
    %s27 = scalar_lea.sflag [#allocation4], 1
    %28 = vsyncpa %s27, 0
    loop: start=0, step=1, limit=4
    $region2: #{tpu_custom_call.1} parent=1 // loop_pre_header
      _
    $region3: #{tpu_custom_call.1} parent=1 // loop_header
      %s30 = sphi 0, %s34
      %p31 = scmp.ge.s32.totalorder %s30, 4
      %s40 = sphi 0, %s42
      %s43 = sphi 0, %s40
      %s44 = sphi 0, %s43
      %s60 = sphi 0, %s44
      %s64 = sphi 0, %s64
      %s66 = sphi 0, %s64
      %s67 = sphi 0, %s66
      %s81 = sphi 0, %s67
      %s85 = sphi 0, %s85
      %s87 = sphi 0, %s85
      %s88 = sphi 0, %s87
      %s102 = sphi 0, %s88
      %s106 = sphi 0, %s106
      %s108 = sphi 0, %s106
      %s109 = sphi 0, %s108
      %s123 = sphi 0, %s109
      %s127 = sphi 0, %s127
      %s129 = sphi 0, %s127
      %s130 = sphi 0, %s129
      %s144 = sphi 0, %s130
      %s148 = sphi 0, %s148
      %s150 = sphi 0, %s148
      %s151 = sphi 0, %s150
      %s165 = sphi 0, %s151
      %s169 = sphi 0, %s169
      %s171 = sphi 0, %s169
      %s172 = sphi 0, %s171
      %s186 = sphi 0, %s172
      %s190 = sphi 0, %s190
      %s192 = sphi 0, %s190
      %s193 = sphi 0, %s192
      %s207 = sphi 0, %s193
      %s211 = sphi 0, %s211
      %s213 = sphi 0, %s211
      %s214 = sphi 0, %s213
      %s228 = sphi 0, %s214
      %s232 = sphi 0, %s232
      %s234 = sphi 0, %s232
      %s235 = sphi 0, %s234
      %s249 = sphi 0, %s235
      %s253 = sphi 0, %s253
      %s255 = sphi 0, %s253
      %s256 = sphi 0, %s255
      %s270 = sphi 0, %s256
      %s274 = sphi 0, %s274
      %s276 = sphi 0, %s274
      %s277 = sphi 0, %s276
      %s291 = sphi 0, %s277
      %s297 = sphi 0, %s299
      %s300 = sphi 0, %s297
      %s301 = sphi 0, %s300
      %s317 = sphi 0, %s301
    $region4: #{tpu_custom_call.1} parent=1 // loop_header_branch
      %33 = sbr.rel (%p31) target = $region8
    $region5: #{tpu_custom_call.1} parent=1 // loop_body
      %s35 = ssub.s32 %s30, 1
      %s36 = ssub.s32 %s30, 2
      %s37 = sadd.s32 %s30, 1
      %s38 = ssub.s32 %s30, %s37
      %p39 = scmp.eq.s32.totalorder %s38, 0
      %s41 = sadd.s32 %s40, 1
      %s42 = scalar_select %p39, %s40, %s41
      %p45 = pneg %p39
      %p46 = scmp.eq.s32.totalorder %s30, 1
      %p47 = por %p45, %p46
      %p48 = scmp.ne.s32.totalorder %s40, %s43
      %p49 = scmp.eq.s32.totalorder %s30, 0
      %p50 = por %p48, %p49
      %p51 = scmp.ne.s32.totalorder %s40, %s43
      %p52 = scmp.eq.s32.totalorder %s35, 1
      %p53 = por %p51, %p52
      %p54 = scmp.ne.s32.totalorder %s43, %s44
      %p55 = scmp.eq.s32.totalorder %s35, 0
      %p56 = por %p54, %p55
      %p57 = scmp.ne.s32.totalorder %s43, %s44
      %p58 = scmp.eq.s32.totalorder %s36, 1
      %p59 = por %p57, %p58
      %p61 = scmp.ne.s32.totalorder %s44, %s60
      %p62 = scmp.eq.s32.totalorder %s36, 0
      %p63 = por %p61, %p62
      %s65 = sadd.s32 %s64, 1
      %p68 = scmp.eq.s32.totalorder %s30, 1
      %p69 = scmp.ne.s32.totalorder %s64, %s66
      %p70 = scmp.eq.s32.totalorder %s30, 0
      %p71 = por %p69, %p70
      %p72 = scmp.ne.s32.totalorder %s64, %s66
      %p73 = scmp.eq.s32.totalorder %s35, 1
      %p74 = por %p72, %p73
      %p75 = scmp.ne.s32.totalorder %s66, %s67
      %p76 = scmp.eq.s32.totalorder %s35, 0
      %p77 = por %p75, %p76
      %p78 = scmp.ne.s32.totalorder %s66, %s67
      %p79 = scmp.eq.s32.totalorder %s36, 1
      %p80 = por %p78, %p79
      %p82 = scmp.ne.s32.totalorder %s67, %s81
      %p83 = scmp.eq.s32.totalorder %s36, 0
      %p84 = por %p82, %p83
      %s86 = sadd.s32 %s85, 1
      %p89 = scmp.eq.s32.totalorder %s30, 1
      %p90 = scmp.ne.s32.totalorder %s85, %s87
      %p91 = scmp.eq.s32.totalorder %s30, 0
      %p92 = por %p90, %p91
      %p93 = scmp.ne.s32.totalorder %s85, %s87
      %p94 = scmp.eq.s32.totalorder %s35, 1
      %p95 = por %p93, %p94
      %p96 = scmp.ne.s32.totalorder %s87, %s88
      %p97 = scmp.eq.s32.totalorder %s35, 0
      %p98 = por %p96, %p97
      %p99 = scmp.ne.s32.totalorder %s87, %s88
      %p100 = scmp.eq.s32.totalorder %s36, 1
      %p101 = por %p99, %p100
      %p103 = scmp.ne.s32.totalorder %s88, %s102
      %p104 = scmp.eq.s32.totalorder %s36, 0
      %p105 = por %p103, %p104
      %s107 = sadd.s32 %s106, 1
      %p110 = scmp.eq.s32.totalorder %s30, 1
      %p111 = scmp.ne.s32.totalorder %s106, %s108
      %p112 = scmp.eq.s32.totalorder %s30, 0
      %p113 = por %p111, %p112
      %p114 = scmp.ne.s32.totalorder %s106, %s108
      %p115 = scmp.eq.s32.totalorder %s35, 1
      %p116 = por %p114, %p115
      %p117 = scmp.ne.s32.totalorder %s108, %s109
      %p118 = scmp.eq.s32.totalorder %s35, 0
      %p119 = por %p117, %p118
      %p120 = scmp.ne.s32.totalorder %s108, %s109
      %p121 = scmp.eq.s32.totalorder %s36, 1
      %p122 = por %p120, %p121
      %p124 = scmp.ne.s32.totalorder %s109, %s123
      %p125 = scmp.eq.s32.totalorder %s36, 0
      %p126 = por %p124, %p125
      %s128 = sadd.s32 %s127, 1
      %p131 = scmp.eq.s32.totalorder %s30, 1
      %p132 = scmp.ne.s32.totalorder %s127, %s129
      %p133 = scmp.eq.s32.totalorder %s30, 0
      %p134 = por %p132, %p133
      %p135 = scmp.ne.s32.totalorder %s127, %s129
      %p136 = scmp.eq.s32.totalorder %s35, 1
      %p137 = por %p135, %p136
      %p138 = scmp.ne.s32.totalorder %s129, %s130
      %p139 = scmp.eq.s32.totalorder %s35, 0
      %p140 = por %p138, %p139
      %p141 = scmp.ne.s32.totalorder %s129, %s130
      %p142 = scmp.eq.s32.totalorder %s36, 1
      %p143 = por %p141, %p142
      %p145 = scmp.ne.s32.totalorder %s130, %s144
      %p146 = scmp.eq.s32.totalorder %s36, 0
      %p147 = por %p145, %p146
      %s149 = sadd.s32 %s148, 1
      %p152 = scmp.eq.s32.totalorder %s30, 1
      %p153 = scmp.ne.s32.totalorder %s148, %s150
      %p154 = scmp.eq.s32.totalorder %s30, 0
      %p155 = por %p153, %p154
      %p156 = scmp.ne.s32.totalorder %s148, %s150
      %p157 = scmp.eq.s32.totalorder %s35, 1
      %p158 = por %p156, %p157
      %p159 = scmp.ne.s32.totalorder %s150, %s151
      %p160 = scmp.eq.s32.totalorder %s35, 0
      %p161 = por %p159, %p160
      %p162 = scmp.ne.s32.totalorder %s150, %s151
      %p163 = scmp.eq.s32.totalorder %s36, 1
      %p164 = por %p162, %p163
      %p166 = scmp.ne.s32.totalorder %s151, %s165
      %p167 = scmp.eq.s32.totalorder %s36, 0
      %p168 = por %p166, %p167
      %s170 = sadd.s32 %s169, 1
      %p173 = scmp.eq.s32.totalorder %s30, 1
      %p174 = scmp.ne.s32.totalorder %s169, %s171
      %p175 = scmp.eq.s32.totalorder %s30, 0
      %p176 = por %p174, %p175
      %p177 = scmp.ne.s32.totalorder %s169, %s171
      %p178 = scmp.eq.s32.totalorder %s35, 1
      %p179 = por %p177, %p178
      %p180 = scmp.ne.s32.totalorder %s171, %s172
      %p181 = scmp.eq.s32.totalorder %s35, 0
      %p182 = por %p180, %p181
      %p183 = scmp.ne.s32.totalorder %s171, %s172
      %p184 = scmp.eq.s32.totalorder %s36, 1
      %p185 = por %p183, %p184
      %p187 = scmp.ne.s32.totalorder %s172, %s186
      %p188 = scmp.eq.s32.totalorder %s36, 0
      %p189 = por %p187, %p188
      %s191 = sadd.s32 %s190, 1
      %p194 = scmp.eq.s32.totalorder %s30, 1
      %p195 = scmp.ne.s32.totalorder %s190, %s192
      %p196 = scmp.eq.s32.totalorder %s30, 0
      %p197 = por %p195, %p196
      %p198 = scmp.ne.s32.totalorder %s190, %s192
      %p199 = scmp.eq.s32.totalorder %s35, 1
      %p200 = por %p198, %p199
      %p201 = scmp.ne.s32.totalorder %s192, %s193
      %p202 = scmp.eq.s32.totalorder %s35, 0
      %p203 = por %p201, %p202
      %p204 = scmp.ne.s32.totalorder %s192, %s193
      %p205 = scmp.eq.s32.totalorder %s36, 1
      %p206 = por %p204, %p205
      %p208 = scmp.ne.s32.totalorder %s193, %s207
      %p209 = scmp.eq.s32.totalorder %s36, 0
      %p210 = por %p208, %p209
      %s212 = sadd.s32 %s211, 1
      %p215 = scmp.eq.s32.totalorder %s30, 1
      %p216 = scmp.ne.s32.totalorder %s211, %s213
      %p217 = scmp.eq.s32.totalorder %s30, 0
      %p218 = por %p216, %p217
      %p219 = scmp.ne.s32.totalorder %s211, %s213
      %p220 = scmp.eq.s32.totalorder %s35, 1
      %p221 = por %p219, %p220
      %p222 = scmp.ne.s32.totalorder %s213, %s214
      %p223 = scmp.eq.s32.totalorder %s35, 0
      %p224 = por %p222, %p223
      %p225 = scmp.ne.s32.totalorder %s213, %s214
      %p226 = scmp.eq.s32.totalorder %s36, 1
      %p227 = por %p225, %p226
      %p229 = scmp.ne.s32.totalorder %s214, %s228
      %p230 = scmp.eq.s32.totalorder %s36, 0
      %p231 = por %p229, %p230
      %s233 = sadd.s32 %s232, 1
      %p236 = scmp.eq.s32.totalorder %s30, 1
      %p237 = scmp.ne.s32.totalorder %s232, %s234
      %p238 = scmp.eq.s32.totalorder %s30, 0
      %p239 = por %p237, %p238
      %p240 = scmp.ne.s32.totalorder %s232, %s234
      %p241 = scmp.eq.s32.totalorder %s35, 1
      %p242 = por %p240, %p241
      %p243 = scmp.ne.s32.totalorder %s234, %s235
      %p244 = scmp.eq.s32.totalorder %s35, 0
      %p245 = por %p243, %p244
      %p246 = scmp.ne.s32.totalorder %s234, %s235
      %p247 = scmp.eq.s32.totalorder %s36, 1
      %p248 = por %p246, %p247
      %p250 = scmp.ne.s32.totalorder %s235, %s249
      %p251 = scmp.eq.s32.totalorder %s36, 0
      %p252 = por %p250, %p251
      %s254 = sadd.s32 %s253, 1
      %p257 = scmp.eq.s32.totalorder %s30, 1
      %p258 = scmp.ne.s32.totalorder %s253, %s255
      %p259 = scmp.eq.s32.totalorder %s30, 0
      %p260 = por %p258, %p259
      %p261 = scmp.ne.s32.totalorder %s253, %s255
      %p262 = scmp.eq.s32.totalorder %s35, 1
      %p263 = por %p261, %p262
      %p264 = scmp.ne.s32.totalorder %s255, %s256
      %p265 = scmp.eq.s32.totalorder %s35, 0
      %p266 = por %p264, %p265
      %p267 = scmp.ne.s32.totalorder %s255, %s256
      %p268 = scmp.eq.s32.totalorder %s36, 1
      %p269 = por %p267, %p268
      %p271 = scmp.ne.s32.totalorder %s256, %s270
      %p272 = scmp.eq.s32.totalorder %s36, 0
      %p273 = por %p271, %p272
      %s275 = sadd.s32 %s274, 1
      %p278 = scmp.eq.s32.totalorder %s30, 1
      %p279 = scmp.ne.s32.totalorder %s274, %s276
      %p280 = scmp.eq.s32.totalorder %s30, 0
      %p281 = por %p279, %p280
      %p282 = scmp.ne.s32.totalorder %s274, %s276
      %p283 = scmp.eq.s32.totalorder %s35, 1
      %p284 = por %p282, %p283
      %p285 = scmp.ne.s32.totalorder %s276, %s277
      %p286 = scmp.eq.s32.totalorder %s35, 0
      %p287 = por %p285, %p286
      %p288 = scmp.ne.s32.totalorder %s276, %s277
      %p289 = scmp.eq.s32.totalorder %s36, 1
      %p290 = por %p288, %p289
      %p292 = scmp.ne.s32.totalorder %s277, %s291
      %p293 = scmp.eq.s32.totalorder %s36, 0
      %p294 = por %p292, %p293
      %s295 = ssub.s32 %s30, %s37
      %p296 = scmp.eq.s32.totalorder %s295, 0
      %s298 = sadd.s32 %s297, 1
      %s299 = scalar_select %p296, %s297, %s298
      %p302 = pneg %p296
      %p303 = scmp.eq.s32.totalorder %s30, 1
      %p304 = por %p302, %p303
      %p305 = scmp.ne.s32.totalorder %s297, %s300
      %p306 = scmp.eq.s32.totalorder %s30, 0
      %p307 = por %p305, %p306
      %p308 = scmp.ne.s32.totalorder %s297, %s300
      %p309 = scmp.eq.s32.totalorder %s35, 1
      %p310 = por %p308, %p309
      %p311 = scmp.ne.s32.totalorder %s300, %s301
      %p312 = scmp.eq.s32.totalorder %s35, 0
      %p313 = por %p311, %p312
      %p314 = scmp.ne.s32.totalorder %s300, %s301
      %p315 = scmp.eq.s32.totalorder %s36, 1
      %p316 = por %p314, %p315
      %p318 = scmp.ne.s32.totalorder %s301, %s317
      %p319 = scmp.eq.s32.totalorder %s36, 0
      %p320 = por %p318, %p319
      %p321 = scmp.le.s32.totalorder 1, %s30
      %p322 = scmp.lt.s32.totalorder %s30, 3
      %p323 = pnand %p321, %p322
      %p324 = pneg %p323
      // Predicated region
      $region9: #{tpu_custom_call.1} parent=5 // pred_check
        _
      $region10: #{tpu_custom_call.1} parent=5 // pred_check_branch
        %326 = sbr.rel (%p323) target = $region12
      $region11: #{tpu_custom_call.1} parent=5 // pred_region
        %s327 = ssub.s32 %s30, 1
        // Predicated region
        $region13: #{tpu_custom_call.1} parent=11 // pred_check
          %p328 = pneg %p77
        $region14: #{tpu_custom_call.1} parent=11 // pred_check_branch
          %330 = sbr.rel (%p328) target = $region16
        $region15: #{tpu_custom_call.1} parent=11 // pred_region
          %s332 = ssub.s32 16, 16
          %333 = vsyncadd [#allocation6], %s332
          %s335 = sshll.u32 [#allocation5], 4
          %s336 = int_to_ptr.vmem [resolvable:$true] %s335
          %338 = dma.hbm_to_vmem [thread:$0]  %s1, 16, %s336, [#allocation6]
        $region16: #{tpu_custom_call.1} parent=11 // pred_fallthru
          _
        // Predicated region
        $region17: #{tpu_custom_call.1} parent=11 // pred_check
          %p339 = pneg %p98
        $region18: #{tpu_custom_call.1} parent=11 // pred_check_branch
          %341 = sbr.rel (%p339) target = $region20
        $region19: #{tpu_custom_call.1} parent=11 // pred_region
          %s343 = ssub.s32 256, 256
          %344 = vsyncadd [#allocation6], %s343
          %s345 = sshll.u32 [#allocation7], 4
          %s346 = int_to_ptr.vmem [resolvable:$true] %s345
          %351 = dma.hbm_to_vmem [thread:$0]  %s2, 256, %s346, [#allocation6], 64, 64, 4
        $region20: #{tpu_custom_call.1} parent=11 // pred_fallthru
          _
        // Predicated region
        $region21: #{tpu_custom_call.1} parent=11 // pred_check
          %p352 = pneg %p119
        $region22: #{tpu_custom_call.1} parent=11 // pred_check_branch
          %354 = sbr.rel (%p352) target = $region24
        $region23: #{tpu_custom_call.1} parent=11 // pred_region
          %s356 = ssub.s32 512, 512
          %357 = vsyncadd [#allocation9], %s356
          %s358 = sshll.u32 [#allocation8], 4
          %s359 = int_to_ptr.vmem [resolvable:$true] %s358
          %364 = dma.hbm_to_vmem [thread:$0]  %s3, 512, %s359, [#allocation9], 128, 128, 8
        $region24: #{tpu_custom_call.1} parent=11 // pred_fallthru
          _
        // Predicated region
        $region25: #{tpu_custom_call.1} parent=11 // pred_check
          %p365 = pneg %p140
        $region26: #{tpu_custom_call.1} parent=11 // pred_check_branch
          %367 = sbr.rel (%p365) target = $region28
        $region27: #{tpu_custom_call.1} parent=11 // pred_region
          %s369 = ssub.s32 256, 256
          %370 = vsyncadd [#allocation9], %s369
          %s371 = sshll.u32 [#allocation10], 4
          %s372 = int_to_ptr.vmem [resolvable:$true] %s371
          %377 = dma.hbm_to_vmem [thread:$0]  %s4, 256, %s372, [#allocation9], 64, 64, 4
        $region28: #{tpu_custom_call.1} parent=11 // pred_fallthru
          _
        // Predicated region
        $region29: #{tpu_custom_call.1} parent=11 // pred_check
          %p378 = pneg %p161
        $region30: #{tpu_custom_call.1} parent=11 // pred_check_branch
          %380 = sbr.rel (%p378) target = $region32
        $region31: #{tpu_custom_call.1} parent=11 // pred_region
          %s382 = ssub.s32 32, 32
          %383 = vsyncadd [#allocation12], %s382
          %s385 = sshll.u32 [#allocation11], 4
          %s386 = int_to_ptr.vmem [resolvable:$true] %s385
          %388 = dma.hbm_to_vmem [thread:$0]  %s5, 32, %s386, [#allocation12]
        $region32: #{tpu_custom_call.1} parent=11 // pred_fallthru
          _
        // Predicated region
        $region33: #{tpu_custom_call.1} parent=11 // pred_check
          %p389 = pneg %p182
        $region34: #{tpu_custom_call.1} parent=11 // pred_check_branch
          %391 = sbr.rel (%p389) target = $region36
        $region35: #{tpu_custom_call.1} parent=11 // pred_region
          %s393 = ssub.s32 256, 256
          %394 = vsyncadd [#allocation12], %s393
          %s395 = sshll.u32 [#allocation13], 4
          %s396 = int_to_ptr.vmem [resolvable:$true] %s395
          %401 = dma.hbm_to_vmem [thread:$0]  %s6, 256, %s396, [#allocation12], 64, 64, 4
        $region36: #{tpu_custom_call.1} parent=11 // pred_fallthru
          _
        // Predicated region
        $region37: #{tpu_custom_call.1} parent=11 // pred_check
          %p402 = pneg %p203
        $region38: #{tpu_custom_call.1} parent=11 // pred_check_branch
          %404 = sbr.rel (%p402) target = $region40
        $region39: #{tpu_custom_call.1} parent=11 // pred_region
          %s406 = ssub.s32 16, 16
          %407 = vsyncadd [#allocation15], %s406
          %s409 = sshll.u32 [#allocation14], 4
          %s410 = int_to_ptr.vmem [resolvable:$true] %s409
          %412 = dma.hbm_to_vmem [thread:$0]  %s7, 16, %s410, [#allocation15]
        $region40: #{tpu_custom_call.1} parent=11 // pred_fallthru
          _
        // Predicated region
        $region41: #{tpu_custom_call.1} parent=11 // pred_check
          %p413 = pneg %p224
        $region42: #{tpu_custom_call.1} parent=11 // pred_check_branch
          %415 = sbr.rel (%p413) target = $region44
        $region43: #{tpu_custom_call.1} parent=11 // pred_region
          %s417 = ssub.s32 256, 256
          %418 = vsyncadd [#allocation15], %s417
          %s419 = sshll.u32 [#allocation16], 4
          %s420 = int_to_ptr.vmem [resolvable:$true] %s419
          %425 = dma.hbm_to_vmem [thread:$0]  %s8, 256, %s420, [#allocation15], 64, 64, 4
        $region44: #{tpu_custom_call.1} parent=11 // pred_fallthru
          _
        // Predicated region
        $region45: #{tpu_custom_call.1} parent=11 // pred_check
          %p426 = pneg %p245
        $region46: #{tpu_custom_call.1} parent=11 // pred_check_branch
          %428 = sbr.rel (%p426) target = $region48
        $region47: #{tpu_custom_call.1} parent=11 // pred_region
          %s430 = ssub.s32 16, 16
          %431 = vsyncadd [#allocation18], %s430
          %s433 = sshll.u32 [#allocation17], 4
          %s434 = int_to_ptr.vmem [resolvable:$true] %s433
          %436 = dma.hbm_to_vmem [thread:$0]  %s9, 16, %s434, [#allocation18]
        $region48: #{tpu_custom_call.1} parent=11 // pred_fallthru
          _
        // Predicated region
        $region49: #{tpu_custom_call.1} parent=11 // pred_check
          %p437 = pneg %p266
        $region50: #{tpu_custom_call.1} parent=11 // pred_check_branch
          %439 = sbr.rel (%p437) target = $region52
        $region51: #{tpu_custom_call.1} parent=11 // pred_region
          %s441 = ssub.s32 256, 256
          %442 = vsyncadd [#allocation18], %s441
          %s443 = sshll.u32 [#allocation19], 4
          %s444 = int_to_ptr.vmem [resolvable:$true] %s443
          %449 = dma.hbm_to_vmem [thread:$0]  %s10, 256, %s444, [#allocation18], 64, 64, 4
        $region52: #{tpu_custom_call.1} parent=11 // pred_fallthru
          _
        // Predicated region
        $region53: #{tpu_custom_call.1} parent=11 // pred_check
          %p450 = pneg %p287
        $region54: #{tpu_custom_call.1} parent=11 // pred_check_branch
          %452 = sbr.rel (%p450) target = $region56
        $region55: #{tpu_custom_call.1} parent=11 // pred_region
          %s454 = ssub.s32 16, 16
          %455 = vsyncadd [#allocation21], %s454
          %s457 = sshll.u32 [#allocation20], 4
          %s458 = int_to_ptr.vmem [resolvable:$true] %s457
          %460 = dma.hbm_to_vmem [thread:$0]  %s11, 16, %s458, [#allocation21]
        $region56: #{tpu_custom_call.1} parent=11 // pred_fallthru
          _
      $region12: #{tpu_custom_call.1} parent=5 // pred_fallthru
        _
      %p461 = scmp.lt.s32.totalorder %s30, 2
      // Predicated region
      $region57: #{tpu_custom_call.1} parent=5 // pred_check
        %p462 = pneg %p461
      $region58: #{tpu_custom_call.1} parent=5 // pred_check_branch
        %464 = sbr.rel (%p462) target = $region60
      $region59: #{tpu_custom_call.1} parent=5 // pred_region
        // Predicated region
        $region61: #{tpu_custom_call.1} parent=59 // pred_check
          %p465 = pneg %p50
        $region62: #{tpu_custom_call.1} parent=59 // pred_check_branch
          %467 = sbr.rel (%p465) target = $region64
        $region63: #{tpu_custom_call.1} parent=59 // pred_region
          %s468 = sand.u32 %s40, 1
          %s469 = scalar_lea.sflag [#allocation3], %s468
          %s470 = sand.u32 %s40, 1
          %s471 = smul.addr %s470, 128
          %s472 = scalar_lea.vmem [#allocation2], %s471
          %s473 = smul.u32 8, %s30
          %s475 = ssub.s32 2048, 2048
          %476 = vsyncadd %s469, %s475
          %s477 = smul.addr %s473, 4
          %s478 = smul.addr %s477, 64
          %s479 = scalar_lea.hbm %s0, %s478
          %s480 = sshll.u32 %s472, 4
          %s481 = int_to_ptr.vmem [resolvable:$true] %s480
          %486 = dma.hbm_to_vmem [thread:$0]  %s479, 2048, %s481, %s469, 64, 64, 4
        $region64: #{tpu_custom_call.1} parent=59 // pred_fallthru
          _
      $region60: #{tpu_custom_call.1} parent=5 // pred_fallthru
        _
      %p487 = scmp.le.s32.totalorder 1, %s30
      %p488 = scmp.lt.s32.totalorder %s30, 3
      %p489 = pnand %p487, %p488
      %p490 = pneg %p489
      // Predicated region
      $region65: #{tpu_custom_call.1} parent=5 // pred_check
        _
      $region66: #{tpu_custom_call.1} parent=5 // pred_check_branch
        %492 = sbr.rel (%p489) target = $region68
      $region67: #{tpu_custom_call.1} parent=5 // pred_region
        %s493 = ssub.s32 %s30, 1
        %s494 = sand.u32 %s43, 1
        %s495 = scalar_lea.sflag [#allocation3], %s494
        %s496 = sand.u32 %s43, 1
        %s497 = smul.addr %s496, 128
        %s498 = scalar_lea.vmem [#allocation2], %s497
        // Predicated region
        $region69: #{tpu_custom_call.1} parent=67 // pred_check
          %p499 = pneg %p56
        $region70: #{tpu_custom_call.1} parent=67 // pred_check_branch
          %501 = sbr.rel (%p499) target = $region72
        $region71: #{tpu_custom_call.1} parent=67 // pred_region
          %502 = dma.done %s495, 2048
        $region72: #{tpu_custom_call.1} parent=67 // pred_fallthru
          _
        // Predicated region
        $region73: #{tpu_custom_call.1} parent=67 // pred_check
          %p503 = pneg %p77
        $region74: #{tpu_custom_call.1} parent=67 // pred_check_branch
          %505 = sbr.rel (%p503) target = $region76
        $region75: #{tpu_custom_call.1} parent=67 // pred_region
          %506 = dma.done [#allocation6], 16
        $region76: #{tpu_custom_call.1} parent=67 // pred_fallthru
          _
        // Predicated region
        $region77: #{tpu_custom_call.1} parent=67 // pred_check
          %p507 = pneg %p98
        $region78: #{tpu_custom_call.1} parent=67 // pred_check_branch
          %509 = sbr.rel (%p507) target = $region80
        $region79: #{tpu_custom_call.1} parent=67 // pred_region
          %510 = dma.done [#allocation6], 256
        $region80: #{tpu_custom_call.1} parent=67 // pred_fallthru
          _
        // Predicated region
        $region81: #{tpu_custom_call.1} parent=67 // pred_check
          %p511 = pneg %p119
        $region82: #{tpu_custom_call.1} parent=67 // pred_check_branch
          %513 = sbr.rel (%p511) target = $region84
        $region83: #{tpu_custom_call.1} parent=67 // pred_region
          %514 = dma.done [#allocation9], 512
        $region84: #{tpu_custom_call.1} parent=67 // pred_fallthru
          _
        // Predicated region
        $region85: #{tpu_custom_call.1} parent=67 // pred_check
          %p515 = pneg %p140
        $region86: #{tpu_custom_call.1} parent=67 // pred_check_branch
          %517 = sbr.rel (%p515) target = $region88
        $region87: #{tpu_custom_call.1} parent=67 // pred_region
          %518 = dma.done [#allocation9], 256
        $region88: #{tpu_custom_call.1} parent=67 // pred_fallthru
          _
        // Predicated region
        $region89: #{tpu_custom_call.1} parent=67 // pred_check
          %p519 = pneg %p161
        $region90: #{tpu_custom_call.1} parent=67 // pred_check_branch
          %521 = sbr.rel (%p519) target = $region92
        $region91: #{tpu_custom_call.1} parent=67 // pred_region
          %522 = dma.done [#allocation12], 32
        $region92: #{tpu_custom_call.1} parent=67 // pred_fallthru
          _
        // Predicated region
        $region93: #{tpu_custom_call.1} parent=67 // pred_check
          %p523 = pneg %p182
        $region94: #{tpu_custom_call.1} parent=67 // pred_check_branch
          %525 = sbr.rel (%p523) target = $region96
        $region95: #{tpu_custom_call.1} parent=67 // pred_region
          %526 = dma.done [#allocation12], 256
        $region96: #{tpu_custom_call.1} parent=67 // pred_fallthru
          _
        // Predicated region
        $region97: #{tpu_custom_call.1} parent=67 // pred_check
          %p527 = pneg %p203
        $region98: #{tpu_custom_call.1} parent=67 // pred_check_branch
          %529 = sbr.rel (%p527) target = $region100
        $region99: #{tpu_custom_call.1} parent=67 // pred_region
          %530 = dma.done [#allocation15], 16
        $region100: #{tpu_custom_call.1} parent=67 // pred_fallthru
          _
        // Predicated region
        $region101: #{tpu_custom_call.1} parent=67 // pred_check
          %p531 = pneg %p224
        $region102: #{tpu_custom_call.1} parent=67 // pred_check_branch
          %533 = sbr.rel (%p531) target = $region104
        $region103: #{tpu_custom_call.1} parent=67 // pred_region
          %534 = dma.done [#allocation15], 256
        $region104: #{tpu_custom_call.1} parent=67 // pred_fallthru
          _
        // Predicated region
        $region105: #{tpu_custom_call.1} parent=67 // pred_check
          %p535 = pneg %p245
        $region106: #{tpu_custom_call.1} parent=67 // pred_check_branch
          %537 = sbr.rel (%p535) target = $region108
        $region107: #{tpu_custom_call.1} parent=67 // pred_region
          %538 = dma.done [#allocation18], 16
        $region108: #{tpu_custom_call.1} parent=67 // pred_fallthru
          _
        // Predicated region
        $region109: #{tpu_custom_call.1} parent=67 // pred_check
          %p539 = pneg %p266
        $region110: #{tpu_custom_call.1} parent=67 // pred_check_branch
          %541 = sbr.rel (%p539) target = $region112
        $region111: #{tpu_custom_call.1} parent=67 // pred_region
          %542 = dma.done [#allocation18], 256
        $region112: #{tpu_custom_call.1} parent=67 // pred_fallthru
          _
        // Predicated region
        $region113: #{tpu_custom_call.1} parent=67 // pred_check
          %p543 = pneg %p287
        $region114: #{tpu_custom_call.1} parent=67 // pred_check_branch
          %545 = sbr.rel (%p543) target = $region116
        $region115: #{tpu_custom_call.1} parent=67 // pred_region
          %546 = dma.done [#allocation21], 16
        $region116: #{tpu_custom_call.1} parent=67 // pred_fallthru
          _
        %s547 = sand.u32 %s43, 1
        %s548 = scalar_lea.sflag [#allocation3], %s547
        %s549 = sand.u32 %s43, 1
        %s550 = smul.addr %s549, 128
        %s551 = scalar_lea.vmem [#allocation2], %s550
        %p552 = pneg %p56
        %p553 = pneg %p53
        %p554 = pneg %p77
        %p555 = pneg %p74
        %p556 = pneg %p98
        %p557 = pneg %p95
        %p558 = pneg %p119
        %p559 = pneg %p116
        %p560 = pneg %p140
        %p561 = pneg %p137
        %p562 = pneg %p161
        %p563 = pneg %p158
        %p564 = pneg %p182
        %p565 = pneg %p179
        %p566 = pneg %p203
        %p567 = pneg %p200
        %p568 = pneg %p224
        %p569 = pneg %p221
        %p570 = pneg %p245
        %p571 = pneg %p242
        %p572 = pneg %p266
        %p573 = pneg %p263
        %p574 = pneg %p287
        %p575 = pneg %p284
        %p576 = pneg %p313
        %p577 = pneg %p310
        %s578 = sand.u32 %s300, 1
        %s579 = scalar_lea.sflag [#allocation4], %s578
        %s580 = sand.u32 %s300, 1
        %s581 = smul.addr %s580, 8
        %s582 = scalar_lea.vmem [#allocation22], %s581
        %s583 = smul.u32 8, %s35
        %v585 = vld [vmem:[%s498] sm:$0xf]
        %v586 = vld [vmem:[%s498 + $0x4] sm:$0xf]
        %v587 = vld [vmem:[%s498 + $0x8] sm:$0xf]
        %v588 = vld [vmem:[%s498 + $0xc] sm:$0xf]
        %v589 = vld [vmem:[%s498 + $0x10] sm:$0xf]
        %v590 = vld [vmem:[%s498 + $0x14] sm:$0xf]
        %v591 = vld [vmem:[%s498 + $0x18] sm:$0xf]
        %v592 = vld [vmem:[%s498 + $0x1c] sm:$0xf]
        %v593 = vld [vmem:[%s498 + $0x20] sm:$0xf]
        %v594 = vld [vmem:[%s498 + $0x24] sm:$0xf]
        %v595 = vld [vmem:[%s498 + $0x28] sm:$0xf]
        %v596 = vld [vmem:[%s498 + $0x2c] sm:$0xf]
        %v597 = vld [vmem:[%s498 + $0x30] sm:$0xf]
        %v598 = vld [vmem:[%s498 + $0x34] sm:$0xf]
        %v599 = vld [vmem:[%s498 + $0x38] sm:$0xf]
        %v600 = vld [vmem:[%s498 + $0x3c] sm:$0xf]
        %v601 = vld [vmem:[%s498 + $0x40] sm:$0xf]
        %v602 = vld [vmem:[%s498 + $0x44] sm:$0xf]
        %v603 = vld [vmem:[%s498 + $0x48] sm:$0xf]
        %v604 = vld [vmem:[%s498 + $0x4c] sm:$0xf]
        %v605 = vld [vmem:[%s498 + $0x50] sm:$0xf]
        %v606 = vld [vmem:[%s498 + $0x54] sm:$0xf]
        %v607 = vld [vmem:[%s498 + $0x58] sm:$0xf]
        %v608 = vld [vmem:[%s498 + $0x5c] sm:$0xf]
        %v609 = vld [vmem:[%s498 + $0x60] sm:$0xf]
        %v610 = vld [vmem:[%s498 + $0x64] sm:$0xf]
        %v611 = vld [vmem:[%s498 + $0x68] sm:$0xf]
        %v612 = vld [vmem:[%s498 + $0x6c] sm:$0xf]
        %v613 = vld [vmem:[%s498 + $0x70] sm:$0xf]
        %v614 = vld [vmem:[%s498 + $0x74] sm:$0xf]
        %v615 = vld [vmem:[%s498 + $0x78] sm:$0xf]
        %v616 = vld [vmem:[%s498 + $0x7c] sm:$0xf]
        %v617 = vunpack.c.l.bf16 %v585
        %v618 = vunpack.c.l.bf16 %v586
        %v619 = vunpack.c.l.bf16 %v587
        %v620 = vunpack.c.l.bf16 %v588
        %v621 = vunpack.c.l.bf16 %v589
        %v622 = vunpack.c.l.bf16 %v590
        %v623 = vunpack.c.l.bf16 %v591
        %v624 = vunpack.c.l.bf16 %v592
        %v625 = vunpack.c.l.bf16 %v593
        %v626 = vunpack.c.l.bf16 %v594
        %v627 = vunpack.c.l.bf16 %v595
        %v628 = vunpack.c.l.bf16 %v596
        %v629 = vunpack.c.l.bf16 %v597
        %v630 = vunpack.c.l.bf16 %v598
        %v631 = vunpack.c.l.bf16 %v599
        %v632 = vunpack.c.l.bf16 %v600
        %v633 = vunpack.c.l.bf16 %v601
        %v634 = vunpack.c.l.bf16 %v602
        %v635 = vunpack.c.l.bf16 %v603
        %v636 = vunpack.c.l.bf16 %v604
        %v637 = vunpack.c.l.bf16 %v605
        %v638 = vunpack.c.l.bf16 %v606
        %v639 = vunpack.c.l.bf16 %v607
        %v640 = vunpack.c.l.bf16 %v608
        %v641 = vunpack.c.l.bf16 %v609
        %v642 = vunpack.c.l.bf16 %v610
        %v643 = vunpack.c.l.bf16 %v611
        %v644 = vunpack.c.l.bf16 %v612
        %v645 = vunpack.c.l.bf16 %v613
        %v646 = vunpack.c.l.bf16 %v614
        %v647 = vunpack.c.l.bf16 %v615
        %v648 = vunpack.c.l.bf16 %v616
        %vm649 = vcmask 261120
        %v650 = vsel %vm649, %v617, 0.0
        %v651 = vsel %vm649, %v618, 0.0
        %v652 = vadd.f32 %v650, %v651
        %v653 = vsel %vm649, %v619, 0.0
        %v654 = vadd.f32 %v652, %v653
        %v655 = vsel %vm649, %v620, 0.0
        %v656 = vadd.f32 %v654, %v655
        %v657 = vrot.slane %v656, 4
        %v658 = vadd.f32 %v656, %v657
        %v659 = vrot.slane %v658, 2
        %v660 = vadd.f32 %v658, %v659
        %v661 = vrot.slane %v660, 1
        %v662 = vadd.f32 %v660, %v661
        %v663 = vsel %vm649, %v621, 0.0
        %v664 = vsel %vm649, %v622, 0.0
        %v665 = vadd.f32 %v663, %v664
        %v666 = vsel %vm649, %v623, 0.0
        %v667 = vadd.f32 %v665, %v666
        %v668 = vsel %vm649, %v624, 0.0
        %v669 = vadd.f32 %v667, %v668
        %v670 = vrot.slane %v669, 4
        %v671 = vadd.f32 %v669, %v670
        %v672 = vrot.slane %v671, 2
        %v673 = vadd.f32 %v671, %v672
        %v674 = vrot.slane %v673, 1
        %v675 = vadd.f32 %v673, %v674
        %v676 = vsel %vm649, %v625, 0.0
        %v677 = vsel %vm649, %v626, 0.0
        %v678 = vadd.f32 %v676, %v677
        %v679 = vsel %vm649, %v627, 0.0
        %v680 = vadd.f32 %v678, %v679
        %v681 = vsel %vm649, %v628, 0.0
        %v682 = vadd.f32 %v680, %v681
        %v683 = vrot.slane %v682, 4
        %v684 = vadd.f32 %v682, %v683
        %v685 = vrot.slane %v684, 2
        %v686 = vadd.f32 %v684, %v685
        %v687 = vrot.slane %v686, 1
        %v688 = vadd.f32 %v686, %v687
        %v689 = vsel %vm649, %v629, 0.0
        %v690 = vsel %vm649, %v630, 0.0
        %v691 = vadd.f32 %v689, %v690
        %v692 = vsel %vm649, %v631, 0.0
        %v693 = vadd.f32 %v691, %v692
        %v694 = vsel %vm649, %v632, 0.0
        %v695 = vadd.f32 %v693, %v694
        %v696 = vrot.slane %v695, 4
        %v697 = vadd.f32 %v695, %v696
        %v698 = vrot.slane %v697, 2
        %v699 = vadd.f32 %v697, %v698
        %v700 = vrot.slane %v699, 1
        %v701 = vadd.f32 %v699, %v700
        %v702 = vsel %vm649, %v633, 0.0
        %v703 = vsel %vm649, %v634, 0.0
        %v704 = vadd.f32 %v702, %v703
        %v705 = vsel %vm649, %v635, 0.0
        %v706 = vadd.f32 %v704, %v705
        %v707 = vsel %vm649, %v636, 0.0
        %v708 = vadd.f32 %v706, %v707
        %v709 = vrot.slane %v708, 4
        %v710 = vadd.f32 %v708, %v709
        %v711 = vrot.slane %v710, 2
        %v712 = vadd.f32 %v710, %v711
        %v713 = vrot.slane %v712, 1
        %v714 = vadd.f32 %v712, %v713
        %v715 = vsel %vm649, %v637, 0.0
        %v716 = vsel %vm649, %v638, 0.0
        %v717 = vadd.f32 %v715, %v716
        %v718 = vsel %vm649, %v639, 0.0
        %v719 = vadd.f32 %v717, %v718
        %v720 = vsel %vm649, %v640, 0.0
        %v721 = vadd.f32 %v719, %v720
        %v722 = vrot.slane %v721, 4
        %v723 = vadd.f32 %v721, %v722
        %v724 = vrot.slane %v723, 2
        %v725 = vadd.f32 %v723, %v724
        %v726 = vrot.slane %v725, 1
        %v727 = vadd.f32 %v725, %v726
        %v728 = vsel %vm649, %v641, 0.0
        %v729 = vsel %vm649, %v642, 0.0
        %v730 = vadd.f32 %v728, %v729
        %v731 = vsel %vm649, %v643, 0.0
        %v732 = vadd.f32 %v730, %v731
        %v733 = vsel %vm649, %v644, 0.0
        %v734 = vadd.f32 %v732, %v733
        %v735 = vrot.slane %v734, 4
        %v736 = vadd.f32 %v734, %v735
        %v737 = vrot.slane %v736, 2
        %v738 = vadd.f32 %v736, %v737
        %v739 = vrot.slane %v738, 1
        %v740 = vadd.f32 %v738, %v739
        %v741 = vsel %vm649, %v645, 0.0
        %v742 = vsel %vm649, %v646, 0.0
        %v743 = vadd.f32 %v741, %v742
        %v744 = vsel %vm649, %v647, 0.0
        %v745 = vadd.f32 %v743, %v744
        %v746 = vsel %vm649, %v648, 0.0
        %v747 = vadd.f32 %v745, %v746
        %v748 = vrot.slane %v747, 4
        %v749 = vadd.f32 %v747, %v748
        %v750 = vrot.slane %v749, 2
        %v751 = vadd.f32 %v749, %v750
        %v752 = vrot.slane %v751, 1
        %v753 = vadd.f32 %v751, %v752
        %v754 = vmul.f32 %v662, 0.04
        %v755 = vmul.f32 %v675, 0.04
        %v756 = vmul.f32 %v688, 0.04
        %v757 = vmul.f32 %v701, 0.04
        %v758 = vmul.f32 %v714, 0.04
        %v759 = vmul.f32 %v727, 0.04
        %v760 = vmul.f32 %v740, 0.04
        %v761 = vmul.f32 %v753, 0.04
        %v762 = vld [vmem:[#allocation5] sm:$0x1]
        %v764 = vlaneseq
        %v765 = vshrl.u32 %v764, 7
        %v766 = vsub.s32 0, %v765
        %v767 = vrot.slane %v762, %v766
        %v769 = vadd.f32 %v754, %v767
        %v770 = vadd.f32 %v755, %v767
        %v771 = vadd.f32 %v756, %v767
        %v772 = vadd.f32 %v757, %v767
        %v773 = vadd.f32 %v758, %v767
        %v774 = vadd.f32 %v759, %v767
        %v775 = vadd.f32 %v760, %v767
        %v776 = vadd.f32 %v761, %v767
        %v777 = vld [vmem:[#allocation7] sm:$0xf]
        %v778 = vld [vmem:[#allocation7 + $0x4] sm:$0xf]
        %v779 = vld [vmem:[#allocation7 + $0x8] sm:$0xf]
        %v780 = vld [vmem:[#allocation7 + $0xc] sm:$0xf]
        %v781 = vadd.bf16 %v585, %v777
        %v782 = vadd.bf16 %v586, %v778
        %v783 = vadd.bf16 %v587, %v779
        %v784 = vadd.bf16 %v588, %v780
        %v785 = vadd.bf16 %v589, %v777
        %v786 = vadd.bf16 %v590, %v778
        %v787 = vadd.bf16 %v591, %v779
        %v788 = vadd.bf16 %v592, %v780
        %v789 = vadd.bf16 %v593, %v777
        %v790 = vadd.bf16 %v594, %v778
        %v791 = vadd.bf16 %v595, %v779
        %v792 = vadd.bf16 %v596, %v780
        %v793 = vadd.bf16 %v597, %v777
        %v794 = vadd.bf16 %v598, %v778
        %v795 = vadd.bf16 %v599, %v779
        %v796 = vadd.bf16 %v600, %v780
        %v797 = vadd.bf16 %v601, %v777
        %v798 = vadd.bf16 %v602, %v778
        %v799 = vadd.bf16 %v603, %v779
        %v800 = vadd.bf16 %v604, %v780
        %v801 = vadd.bf16 %v605, %v777
        %v802 = vadd.bf16 %v606, %v778
        %v803 = vadd.bf16 %v607, %v779
        %v804 = vadd.bf16 %v608, %v780
        %v805 = vadd.bf16 %v609, %v777
        %v806 = vadd.bf16 %v610, %v778
        %v807 = vadd.bf16 %v611, %v779
        %v808 = vadd.bf16 %v612, %v780
        %v809 = vadd.bf16 %v613, %v777
        %v810 = vadd.bf16 %v614, %v778
        %v811 = vadd.bf16 %v615, %v779
        %v812 = vadd.bf16 %v616, %v780
        %v813 = vpack.c.bf16 %v769, %v769
        %v814 = vpack.c.bf16 %v770, %v770
        %v815 = vpack.c.bf16 %v771, %v771
        %v816 = vpack.c.bf16 %v772, %v772
        %v817 = vpack.c.bf16 %v773, %v773
        %v818 = vpack.c.bf16 %v774, %v774
        %v819 = vpack.c.bf16 %v775, %v775
        %v820 = vpack.c.bf16 %v776, %v776
        %v821 = vld [vmem:[#allocation13] sm:$0xf]
        %v822 = vld [vmem:[#allocation13 + $0x4] sm:$0xf]
        %v823 = vld [vmem:[#allocation13 + $0x8] sm:$0xf]
        %v824 = vld [vmem:[#allocation13 + $0xc] sm:$0xf]
        %v825 = vld [vmem:[#allocation14] sm:$0x1]
        %v827 = vlaneseq
        %v828 = vshrl.u32 %v827, 7
        %v829 = vsub.s32 0, %v828
        %v830 = vrot.slane %v825, %v829
        %v840 = vunpack.c.l.b16 %v813
        %v841 = vunpack.c.l.b16 %v814
        %v842 = vunpack.c.l.b16 %v815
        %v843 = vunpack.c.l.b16 %v816
        %v844 = vunpack.c.l.b16 %v817
        %v845 = vunpack.c.l.b16 %v818
        %v846 = vunpack.c.l.b16 %v819
        %v847 = vunpack.c.l.b16 %v820
        %v848 = vrot.slane %v841, 7
        %vm849 = vcmask 1041409
        %v850 = vsel %vm849, %v848, %v840
        %v851 = vrot.slane %v842, 6
        %vm852 = vcmask 1042434
        %v853 = vsel %vm852, %v851, %v850
        %v854 = vrot.slane %v843, 5
        %vm855 = vcmask 1043459
        %v856 = vsel %vm855, %v854, %v853
        %v857 = vrot.slane %v844, 4
        %vm858 = vcmask 1044484
        %v859 = vsel %vm858, %v857, %v856
        %v860 = vrot.slane %v845, 3
        %vm861 = vcmask 1045509
        %v862 = vsel %vm861, %v860, %v859
        %v863 = vrot.slane %v846, 2
        %vm864 = vcmask 1046534
        %v865 = vsel %vm864, %v863, %v862
        %v866 = vrot.slane %v847, 1
        %vm867 = vcmask 1047559
        %v868 = vsel %vm867, %v866, %v865
        %v869 = vpack.c.b16 %v868, %v868
        %v874 = vunpack.c.l.b16 %v821
        %v875 = vunpack.c.l.b16 %v822
        %v876 = vunpack.c.l.b16 %v823
        %v877 = vunpack.c.l.b16 %v824
        %v878 = vpack.c.b16 %v875, %v874
        %v879 = vpack.c.b16 %v877, %v876
        %v883 = vsel %vm649, %v869, 0
        %885 = vmatprep.subr.bf16.mxu0 0
        %886 = vmatpush1.bf16.msra.mxu0 %v878
        %887 = vmatprep.subr.bf16.mxu0 0
        %888 = vmatpush1.bf16.msra.mxu0 %v879
        %889 = vmatprep.subr.bf16.mxu0 0
        %890 = vmatpush1.bf16.msra.mxu0 0
        %891 = vmatprep.subr.bf16.mxu0 0
        %892 = vmatpush1.bf16.msra.mxu0 0
        %893 = vmatprep.subr.bf16.mxu0 0
        %894 = vmatpush1.bf16.msra.mxu0 0
        %895 = vmatprep.subr.bf16.mxu0 0
        %896 = vmatpush1.bf16.msra.mxu0 0
        %897 = vmatprep.subr.bf16.mxu0 0
        %898 = vmatpush1.bf16.msra.mxu0 0
        %899 = vmatprep.subr.bf16.mxu0 0
        %900 = vmatpush1.bf16.msra.mxu0 0
        %901 = vmatprep.subr.bf16.mxu0 0
        %902 = vmatpush1.bf16.msra.mxu0 0
        %903 = vmatprep.subr.bf16.mxu0 0
        %904 = vmatpush1.bf16.msra.mxu0 0
        %905 = vmatprep.subr.bf16.mxu0 0
        %906 = vmatpush1.bf16.msra.mxu0 0
        %907 = vmatprep.subr.bf16.mxu0 0
        %908 = vmatpush1.bf16.msra.mxu0 0
        %909 = vmatprep.subr.bf16.mxu0 0
        %910 = vmatpush1.bf16.msra.mxu0 0
        %911 = vmatprep.subr.bf16.mxu0 0
        %912 = vmatpush1.bf16.msra.mxu0 0
        %913 = vmatprep.subr.bf16.mxu0 0
        %914 = vmatpush1.bf16.msra.mxu0 0
        %915 = vmatprep.subr.bf16.mxu0 0
        %916 = vmatpush1.bf16.msra.mxu0 0
        %917 = vmatprep.mubr.bf16.mxu0 0
        %918 = vmatmul.mubr.bf16.gmra.mrb[0].mxu0 %v883
        %v919 = vpop.f32.mrb[0].mxu0
        %v920 = vadd.f32 %v830, %v919
        %v921 = vpop.f32.mrb[0].mxu0
        %v922 = vpop.f32.mrb[0].mxu0
        %v923 = vpop.f32.mrb[0].mxu0
        %924 = vdwg.mxu0
        %v925 = vld [vmem:[#allocation16] sm:$0xf]
        %v926 = vld [vmem:[#allocation16 + $0x4] sm:$0xf]
        %v927 = vld [vmem:[#allocation16 + $0x8] sm:$0xf]
        %v928 = vld [vmem:[#allocation16 + $0xc] sm:$0xf]
        %v929 = vld [vmem:[#allocation17] sm:$0x1]
        %v931 = vlaneseq
        %v932 = vshrl.u32 %v931, 7
        %v933 = vsub.s32 0, %v932
        %v934 = vrot.slane %v929, %v933
        %v940 = vunpack.c.l.b16 %v925
        %v941 = vunpack.c.l.b16 %v926
        %v942 = vunpack.c.l.b16 %v927
        %v943 = vunpack.c.l.b16 %v928
        %v944 = vpack.c.b16 %v941, %v940
        %v945 = vpack.c.b16 %v943, %v942
        %948 = vmatprep.subr.bf16.mxu0 0
        %949 = vmatpush1.bf16.msra.mxu0 %v944
        %950 = vmatprep.subr.bf16.mxu0 0
        %951 = vmatpush1.bf16.msra.mxu0 %v945
        %952 = vmatprep.subr.bf16.mxu0 0
        %953 = vmatpush1.bf16.msra.mxu0 0
        %954 = vmatprep.subr.bf16.mxu0 0
        %955 = vmatpush1.bf16.msra.mxu0 0
        %956 = vmatprep.subr.bf16.mxu0 0
        %957 = vmatpush1.bf16.msra.mxu0 0
        %958 = vmatprep.subr.bf16.mxu0 0
        %959 = vmatpush1.bf16.msra.mxu0 0
        %960 = vmatprep.subr.bf16.mxu0 0
        %961 = vmatpush1.bf16.msra.mxu0 0
        %962 = vmatprep.subr.bf16.mxu0 0
        %963 = vmatpush1.bf16.msra.mxu0 0
        %964 = vmatprep.subr.bf16.mxu0 0
        %965 = vmatpush1.bf16.msra.mxu0 0
        %966 = vmatprep.subr.bf16.mxu0 0
        %967 = vmatpush1.bf16.msra.mxu0 0
        %968 = vmatprep.subr.bf16.mxu0 0
        %969 = vmatpush1.bf16.msra.mxu0 0
        %970 = vmatprep.subr.bf16.mxu0 0
        %971 = vmatpush1.bf16.msra.mxu0 0
        %972 = vmatprep.subr.bf16.mxu0 0
        %973 = vmatpush1.bf16.msra.mxu0 0
        %974 = vmatprep.subr.bf16.mxu0 0
        %975 = vmatpush1.bf16.msra.mxu0 0
        %976 = vmatprep.subr.bf16.mxu0 0
        %977 = vmatpush1.bf16.msra.mxu0 0
        %978 = vmatprep.subr.bf16.mxu0 0
        %979 = vmatpush1.bf16.msra.mxu0 0
        %980 = vmatprep.mubr.bf16.mxu0 0
        %981 = vmatmul.mubr.bf16.gmra.mrb[0].mxu0 %v883
        %v982 = vpop.f32.mrb[0].mxu0
        %v983 = vadd.f32 %v934, %v982
        %v984 = vpop.f32.mrb[0].mxu0
        %v985 = vpop.f32.mrb[0].mxu0
        %v986 = vpop.f32.mrb[0].mxu0
        %987 = vdwg.mxu0
        %v1020 = vunpack.c.l.b16 %v781
        %v1021 = vunpack.c.l.b16 %v782
        %v1022 = vunpack.c.l.b16 %v783
        %v1023 = vunpack.c.l.b16 %v784
        %v1024 = vunpack.c.l.b16 %v785
        %v1025 = vunpack.c.l.b16 %v786
        %v1026 = vunpack.c.l.b16 %v787
        %v1027 = vunpack.c.l.b16 %v788
        %v1028 = vunpack.c.l.b16 %v789
        %v1029 = vunpack.c.l.b16 %v790
        %v1030 = vunpack.c.l.b16 %v791
        %v1031 = vunpack.c.l.b16 %v792
        %v1032 = vunpack.c.l.b16 %v793
        %v1033 = vunpack.c.l.b16 %v794
        %v1034 = vunpack.c.l.b16 %v795
        %v1035 = vunpack.c.l.b16 %v796
        %v1036 = vunpack.c.l.b16 %v797
        %v1037 = vunpack.c.l.b16 %v798
        %v1038 = vunpack.c.l.b16 %v799
        %v1039 = vunpack.c.l.b16 %v800
        %v1040 = vunpack.c.l.b16 %v801
        %v1041 = vunpack.c.l.b16 %v802
        %v1042 = vunpack.c.l.b16 %v803
        %v1043 = vunpack.c.l.b16 %v804
        %v1044 = vunpack.c.l.b16 %v805
        %v1045 = vunpack.c.l.b16 %v806
        %v1046 = vunpack.c.l.b16 %v807
        %v1047 = vunpack.c.l.b16 %v808
        %v1048 = vunpack.c.l.b16 %v809
        %v1049 = vunpack.c.l.b16 %v810
        %v1050 = vunpack.c.l.b16 %v811
        %v1051 = vunpack.c.l.b16 %v812
        %v1052 = vpack.c.b16 %v1021, %v1020
        %v1053 = vpack.c.b16 %v1023, %v1022
        %v1054 = vpack.c.b16 %v1025, %v1024
        %v1055 = vpack.c.b16 %v1027, %v1026
        %v1056 = vpack.c.b16 %v1029, %v1028
        %v1057 = vpack.c.b16 %v1031, %v1030
        %v1058 = vpack.c.b16 %v1033, %v1032
        %v1059 = vpack.c.b16 %v1035, %v1034
        %v1060 = vpack.c.b16 %v1037, %v1036
        %v1061 = vpack.c.b16 %v1039, %v1038
        %v1062 = vpack.c.b16 %v1041, %v1040
        %v1063 = vpack.c.b16 %v1043, %v1042
        %v1064 = vpack.c.b16 %v1045, %v1044
        %v1065 = vpack.c.b16 %v1047, %v1046
        %v1066 = vpack.c.b16 %v1049, %v1048
        %v1067 = vpack.c.b16 %v1051, %v1050
        %v1069 = vsel %vm649, %v1052, 0
        %v1072 = vsel %vm649, %v1053, 0
        %v1075 = vsel %vm649, %v1054, 0
        %v1078 = vsel %vm649, %v1055, 0
        %v1081 = vsel %vm649, %v1056, 0
        %v1084 = vsel %vm649, %v1057, 0
        %v1087 = vsel %vm649, %v1058, 0
        %v1090 = vsel %vm649, %v1059, 0
        %v1093 = vsel %vm649, %v1060, 0
        %v1096 = vsel %vm649, %v1061, 0
        %v1099 = vsel %vm649, %v1062, 0
        %v1102 = vsel %vm649, %v1063, 0
        %v1105 = vsel %vm649, %v1064, 0
        %v1108 = vsel %vm649, %v1065, 0
        %v1111 = vsel %vm649, %v1066, 0
        %v1114 = vsel %vm649, %v1067, 0
        %1116 = vmatprep.subr.bf16.mxu0 0
        %1117 = vmatpush1.bf16.msra.mxu0 %v944
        %1118 = vmatprep.subr.bf16.mxu0 0
        %1119 = vmatpush1.bf16.msra.mxu0 %v945
        %1120 = vmatprep.subr.bf16.mxu0 0
        %1121 = vmatpush1.bf16.msra.mxu0 0
        %1122 = vmatprep.subr.bf16.mxu0 0
        %1123 = vmatpush1.bf16.msra.mxu0 0
        %1124 = vmatprep.subr.bf16.mxu0 0
        %1125 = vmatpush1.bf16.msra.mxu0 0
        %1126 = vmatprep.subr.bf16.mxu0 0
        %1127 = vmatpush1.bf16.msra.mxu0 0
        %1128 = vmatprep.subr.bf16.mxu0 0
        %1129 = vmatpush1.bf16.msra.mxu0 0
        %1130 = vmatprep.subr.bf16.mxu0 0
        %1131 = vmatpush1.bf16.msra.mxu0 0
        %1132 = vmatprep.subr.bf16.mxu0 0
        %1133 = vmatpush1.bf16.msra.mxu0 0
        %1134 = vmatprep.subr.bf16.mxu0 0
        %1135 = vmatpush1.bf16.msra.mxu0 0
        %1136 = vmatprep.subr.bf16.mxu0 0
        %1137 = vmatpush1.bf16.msra.mxu0 0
        %1138 = vmatprep.subr.bf16.mxu0 0
        %1139 = vmatpush1.bf16.msra.mxu0 0
        %1140 = vmatprep.subr.bf16.mxu0 0
        %1141 = vmatpush1.bf16.msra.mxu0 0
        %1142 = vmatprep.subr.bf16.mxu0 0
        %1143 = vmatpush1.bf16.msra.mxu0 0
        %1144 = vmatprep.subr.bf16.mxu0 0
        %1145 = vmatpush1.bf16.msra.mxu0 0
        %1146 = vmatprep.subr.bf16.mxu0 0
        %1147 = vmatpush1.bf16.msra.mxu0 0
        %1148 = vmatprep.mubr.bf16.mxu0 0
        %1149 = vmatmul.mubr.bf16.gmra.mrb[0].mxu0 %v1069
        %v1150 = vpop.f32.mrb[0].mxu0
        %v1151 = vadd.f32 %v934, %v1150
        %v1152 = vpop.f32.mrb[0].mxu0
        %v1153 = vpop.f32.mrb[0].mxu0
        %v1154 = vadd.f32 %v934, %v1153
        %v1155 = vpop.f32.mrb[0].mxu0
        %1156 = vmatprep.mubr.bf16.mxu0 0
        %1157 = vmatmul.mubr.bf16.gmra.mrb[0].mxu0 %v1072
        %v1158 = vpop.f32.mrb[0].mxu0
        %v1159 = vadd.f32 %v934, %v1158
        %v1160 = vpop.f32.mrb[0].mxu0
        %v1161 = vpop.f32.mrb[0].mxu0
        %v1162 = vadd.f32 %v934, %v1161
        %v1163 = vpop.f32.mrb[0].mxu0
        %1164 = vmatprep.mubr.bf16.mxu0 0
        %1165 = vmatmul.mubr.bf16.gmra.mrb[0].mxu0 %v1075
        %v1166 = vpop.f32.mrb[0].mxu0
        %v1167 = vadd.f32 %v934, %v1166
        %v1168 = vpop.f32.mrb[0].mxu0
        %v1169 = vpop.f32.mrb[0].mxu0
        %v1170 = vadd.f32 %v934, %v1169
        %v1171 = vpop.f32.mrb[0].mxu0
        %1172 = vmatprep.mubr.bf16.mxu0 0
        %1173 = vmatmul.mubr.bf16.gmra.mrb[0].mxu0 %v1078
        %v1174 = vpop.f32.mrb[0].mxu0
        %v1175 = vadd.f32 %v934, %v1174
        %v1176 = vpop.f32.mrb[0].mxu0
        %v1177 = vpop.f32.mrb[0].mxu0
        %v1178 = vadd.f32 %v934, %v1177
        %v1179 = vpop.f32.mrb[0].mxu0
        %1180 = vmatprep.mubr.bf16.mxu0 0
        %1181 = vmatmul.mubr.bf16.gmra.mrb[0].mxu0 %v1081
        %v1182 = vpop.f32.mrb[0].mxu0
        %v1183 = vadd.f32 %v934, %v1182
        %v1184 = vpop.f32.mrb[0].mxu0
        %v1185 = vpop.f32.mrb[0].mxu0
        %v1186 = vadd.f32 %v934, %v1185
        %v1187 = vpop.f32.mrb[0].mxu0
        %1188 = vmatprep.mubr.bf16.mxu0 0
        %1189 = vmatmul.mubr.bf16.gmra.mrb[0].mxu0 %v1084
        %v1190 = vpop.f32.mrb[0].mxu0
        %v1191 = vadd.f32 %v934, %v1190
        %v1192 = vpop.f32.mrb[0].mxu0
        %v1193 = vpop.f32.mrb[0].mxu0
        %v1194 = vadd.f32 %v934, %v1193
        %v1195 = vpop.f32.mrb[0].mxu0
        %1196 = vmatprep.mubr.bf16.mxu0 0
        %1197 = vmatmul.mubr.bf16.gmra.mrb[0].mxu0 %v1087
        %v1198 = vpop.f32.mrb[0].mxu0
        %v1199 = vadd.f32 %v934, %v1198
        %v1200 = vpop.f32.mrb[0].mxu0
        %v1201 = vpop.f32.mrb[0].mxu0
        %v1202 = vadd.f32 %v934, %v1201
        %v1203 = vpop.f32.mrb[0].mxu0
        %1204 = vmatprep.mubr.bf16.mxu0 0
        %1205 = vmatmul.mubr.bf16.gmra.mrb[0].mxu0 %v1090
        %v1206 = vpop.f32.mrb[0].mxu0
        %v1207 = vadd.f32 %v934, %v1206
        %v1208 = vpop.f32.mrb[0].mxu0
        %v1209 = vpop.f32.mrb[0].mxu0
        %v1210 = vadd.f32 %v934, %v1209
        %v1211 = vpop.f32.mrb[0].mxu0
        %1212 = vmatprep.mubr.bf16.mxu0 0
        %1213 = vmatmul.mubr.bf16.gmra.mrb[0].mxu0 %v1093
        %v1214 = vpop.f32.mrb[0].mxu0
        %v1215 = vadd.f32 %v934, %v1214
        %v1216 = vpop.f32.mrb[0].mxu0
        %v1217 = vpop.f32.mrb[0].mxu0
        %v1218 = vadd.f32 %v934, %v1217
        %v1219 = vpop.f32.mrb[0].mxu0
        %1220 = vmatprep.mubr.bf16.mxu0 0
        %1221 = vmatmul.mubr.bf16.gmra.mrb[0].mxu0 %v1096
        %v1222 = vpop.f32.mrb[0].mxu0
        %v1223 = vadd.f32 %v934, %v1222
        %v1224 = vpop.f32.mrb[0].mxu0
        %v1225 = vpop.f32.mrb[0].mxu0
        %v1226 = vadd.f32 %v934, %v1225
        %v1227 = vpop.f32.mrb[0].mxu0
        %1228 = vmatprep.mubr.bf16.mxu0 0
        %1229 = vmatmul.mubr.bf16.gmra.mrb[0].mxu0 %v1099
        %v1230 = vpop.f32.mrb[0].mxu0
        %v1231 = vadd.f32 %v934, %v1230
        %v1232 = vpop.f32.mrb[0].mxu0
        %v1233 = vpop.f32.mrb[0].mxu0
        %v1234 = vadd.f32 %v934, %v1233
        %v1235 = vpop.f32.mrb[0].mxu0
        %1236 = vmatprep.mubr.bf16.mxu0 0
        %1237 = vmatmul.mubr.bf16.gmra.mrb[0].mxu0 %v1102
        %v1238 = vpop.f32.mrb[0].mxu0
        %v1239 = vadd.f32 %v934, %v1238
        %v1240 = vpop.f32.mrb[0].mxu0
        %v1241 = vpop.f32.mrb[0].mxu0
        %v1242 = vadd.f32 %v934, %v1241
        %v1243 = vpop.f32.mrb[0].mxu0
        %1244 = vmatprep.mubr.bf16.mxu0 0
        %1245 = vmatmul.mubr.bf16.gmra.mrb[0].mxu0 %v1105
        %v1246 = vpop.f32.mrb[0].mxu0
        %v1247 = vadd.f32 %v934, %v1246
        %v1248 = vpop.f32.mrb[0].mxu0
        %v1249 = vpop.f32.mrb[0].mxu0
        %v1250 = vadd.f32 %v934, %v1249
        %v1251 = vpop.f32.mrb[0].mxu0
        %1252 = vmatprep.mubr.bf16.mxu0 0
        %1253 = vmatmul.mubr.bf16.gmra.mrb[0].mxu0 %v1108
        %v1254 = vpop.f32.mrb[0].mxu0
        %v1255 = vadd.f32 %v934, %v1254
        %v1256 = vpop.f32.mrb[0].mxu0
        %v1257 = vpop.f32.mrb[0].mxu0
        %v1258 = vadd.f32 %v934, %v1257
        %v1259 = vpop.f32.mrb[0].mxu0
        %1260 = vmatprep.mubr.bf16.mxu0 0
        %1261 = vmatmul.mubr.bf16.gmra.mrb[0].mxu0 %v1111
        %v1262 = vpop.f32.mrb[0].mxu0
        %v1263 = vadd.f32 %v934, %v1262
        %v1264 = vpop.f32.mrb[0].mxu0
        %v1265 = vpop.f32.mrb[0].mxu0
        %v1266 = vadd.f32 %v934, %v1265
        %v1267 = vpop.f32.mrb[0].mxu0
        %1268 = vmatprep.mubr.bf16.mxu0 0
        %1269 = vmatmul.mubr.bf16.gmra.mrb[0].mxu0 %v1114
        %v1270 = vpop.f32.mrb[0].mxu0
        %v1271 = vadd.f32 %v934, %v1270
        %v1272 = vpop.f32.mrb[0].mxu0
        %v1273 = vpop.f32.mrb[0].mxu0
        %v1274 = vadd.f32 %v934, %v1273
        %v1275 = vpop.f32.mrb[0].mxu0
        %1276 = vdwg.mxu0
        %v1277 = vld [vmem:[#allocation10] sm:$0xf]
        %v1278 = vld [vmem:[#allocation10 + $0x4] sm:$0xf]
        %v1279 = vld [vmem:[#allocation10 + $0x8] sm:$0xf]
        %v1280 = vld [vmem:[#allocation10 + $0xc] sm:$0xf]
        %v1281 = vld [vmem:[#allocation11] sm:$0x3]
        %v1282 = vmul.f32 %v920, %v983
        %v1283 = vpack.c.bf16 %v1282, %v1282
        %v1288 = vunpack.c.l.b16 %v1277
        %v1289 = vunpack.c.l.b16 %v1278
        %v1290 = vunpack.c.l.b16 %v1279
        %v1291 = vunpack.c.l.b16 %v1280
        %v1292 = vpack.c.b16 %v1289, %v1288
        %v1293 = vpack.c.b16 %v1291, %v1290
        %v1297 = vsel %vm649, %v1283, 0
        %1299 = vmatprep.subr.bf16.mxu0 0
        %1300 = vmatpush1.bf16.msra.mxu0 %v1292
        %1301 = vmatprep.subr.bf16.mxu0 0
        %1302 = vmatpush1.bf16.msra.mxu0 %v1293
        %1303 = vmatprep.subr.bf16.mxu0 0
        %1304 = vmatpush1.bf16.msra.mxu0 0
        %1305 = vmatprep.subr.bf16.mxu0 0
        %1306 = vmatpush1.bf16.msra.mxu0 0
        %1307 = vmatprep.subr.bf16.mxu0 0
        %1308 = vmatpush1.bf16.msra.mxu0 0
        %1309 = vmatprep.subr.bf16.mxu0 0
        %1310 = vmatpush1.bf16.msra.mxu0 0
        %1311 = vmatprep.subr.bf16.mxu0 0
        %1312 = vmatpush1.bf16.msra.mxu0 0
        %1313 = vmatprep.subr.bf16.mxu0 0
        %1314 = vmatpush1.bf16.msra.mxu0 0
        %1315 = vmatprep.subr.bf16.mxu0 0
        %1316 = vmatpush1.bf16.msra.mxu0 0
        %1317 = vmatprep.subr.bf16.mxu0 0
        %1318 = vmatpush1.bf16.msra.mxu0 0
        %1319 = vmatprep.subr.bf16.mxu0 0
        %1320 = vmatpush1.bf16.msra.mxu0 0
        %1321 = vmatprep.subr.bf16.mxu0 0
        %1322 = vmatpush1.bf16.msra.mxu0 0
        %1323 = vmatprep.subr.bf16.mxu0 0
        %1324 = vmatpush1.bf16.msra.mxu0 0
        %1325 = vmatprep.subr.bf16.mxu0 0
        %1326 = vmatpush1.bf16.msra.mxu0 0
        %1327 = vmatprep.subr.bf16.mxu0 0
        %1328 = vmatpush1.bf16.msra.mxu0 0
        %1329 = vmatprep.subr.bf16.mxu0 0
        %1330 = vmatpush1.bf16.msra.mxu0 0
        %1331 = vmatprep.mubr.bf16.mxu0 0
        %1332 = vmatmul.mubr.bf16.gmra.mrb[0].mxu0 %v1297
        %v1333 = vpop.f32.mrb[0].mxu0
        %v1334 = vadd.f32 0.0, %v1333
        %v1335 = vpop.f32.mrb[0].mxu0
        %v1336 = vpop.f32.mrb[0].mxu0
        %v1337 = vpop.f32.mrb[0].mxu0
        %1338 = vdwg.mxu0
        %v1340 = vcombine.high %v920, %v920
        %v1342 = vunpack.c.l.s4 1966171168
        %v1343 = vunpack.c.0.s8 %v1342
        %v1344 = vlaneseq
        %v1345 = vshrl.u32 %v1344, 7
        %v1346 = vsub.s32 %v1343, %v1345
        %v1347 = vrot.slane %v920, %v1346
        %v1349 = vunpack.c.l.s4 1966171168
        %v1350 = vunpack.c.0.s8 %v1349
        %v1351 = vlaneseq
        %v1352 = vshrl.u32 %v1351, 7
        %v1353 = vsub.s32 %v1350, %v1352
        %v1354 = vrot.slane %v1340, %v1353
        %v1355 = vcombine.high %v1347, %v1347
        %v1356 = vcombine.high %v1354, %v1354
        %v1358 = vunpack.c.l.s4 1966171168
        %v1359 = vunpack.c.0.s8 %v1358
        %v1360 = vlaneseq
        %v1361 = vshrl.u32 %v1360, 7
        %v1362 = vsub.s32 %v1359, %v1361
        %v1363 = vrot.slane %v1347, %v1362
        %v1365 = vunpack.c.l.s4 1966171168
        %v1366 = vunpack.c.0.s8 %v1365
        %v1367 = vlaneseq
        %v1368 = vshrl.u32 %v1367, 7
        %v1369 = vsub.s32 %v1366, %v1368
        %v1370 = vrot.slane %v1354, %v1369
        %v1372 = vunpack.c.l.s4 1966171168
        %v1373 = vunpack.c.0.s8 %v1372
        %v1374 = vlaneseq
        %v1375 = vshrl.u32 %v1374, 7
        %v1376 = vsub.s32 %v1373, %v1375
        %v1377 = vrot.slane %v1355, %v1376
        %v1379 = vunpack.c.l.s4 1966171168
        %v1380 = vunpack.c.0.s8 %v1379
        %v1381 = vlaneseq
        %v1382 = vshrl.u32 %v1381, 7
        %v1383 = vsub.s32 %v1380, %v1382
        %v1384 = vrot.slane %v1356, %v1383
        %v1385 = vcombine.high %v1363, %v1363
        %v1386 = vcombine.high %v1370, %v1370
        %v1387 = vcombine.high %v1377, %v1377
        %v1388 = vcombine.high %v1384, %v1384
        %v1389 = vlaneseq
        %v1390 = vshrl.u32 %v1389, 7
        %v1391 = vsub.s32 0, %v1390
        %v1392 = vrot.slane %v1363, %v1391
        %v1393 = vlaneseq
        %v1394 = vshrl.u32 %v1393, 7
        %v1395 = vsub.s32 0, %v1394
        %v1396 = vrot.slane %v1377, %v1395
        %v1397 = vlaneseq
        %v1398 = vshrl.u32 %v1397, 7
        %v1399 = vsub.s32 0, %v1398
        %v1400 = vrot.slane %v1385, %v1399
        %v1401 = vlaneseq
        %v1402 = vshrl.u32 %v1401, 7
        %v1403 = vsub.s32 0, %v1402
        %v1404 = vrot.slane %v1387, %v1403
        %v1405 = vlaneseq
        %v1406 = vshrl.u32 %v1405, 7
        %v1407 = vsub.s32 0, %v1406
        %v1408 = vrot.slane %v1370, %v1407
        %v1409 = vlaneseq
        %v1410 = vshrl.u32 %v1409, 7
        %v1411 = vsub.s32 0, %v1410
        %v1412 = vrot.slane %v1384, %v1411
        %v1413 = vlaneseq
        %v1414 = vshrl.u32 %v1413, 7
        %v1415 = vsub.s32 0, %v1414
        %v1416 = vrot.slane %v1386, %v1415
        %v1417 = vlaneseq
        %v1418 = vshrl.u32 %v1417, 7
        %v1419 = vsub.s32 0, %v1418
        %v1420 = vrot.slane %v1388, %v1419
        %v1429 = vmul.f32 %v1392, %v1151
        %v1430 = vmul.f32 %v1392, %v1154
        %v1431 = vmul.f32 %v1392, %v1159
        %v1432 = vmul.f32 %v1392, %v1162
        %v1433 = vmul.f32 %v1396, %v1167
        %v1434 = vmul.f32 %v1396, %v1170
        %v1435 = vmul.f32 %v1396, %v1175
        %v1436 = vmul.f32 %v1396, %v1178
        %v1437 = vmul.f32 %v1400, %v1183
        %v1438 = vmul.f32 %v1400, %v1186
        %v1439 = vmul.f32 %v1400, %v1191
        %v1440 = vmul.f32 %v1400, %v1194
        %v1441 = vmul.f32 %v1404, %v1199
        %v1442 = vmul.f32 %v1404, %v1202
        %v1443 = vmul.f32 %v1404, %v1207
        %v1444 = vmul.f32 %v1404, %v1210
        %v1445 = vmul.f32 %v1408, %v1215
        %v1446 = vmul.f32 %v1408, %v1218
        %v1447 = vmul.f32 %v1408, %v1223
        %v1448 = vmul.f32 %v1408, %v1226
        %v1449 = vmul.f32 %v1412, %v1231
        %v1450 = vmul.f32 %v1412, %v1234
        %v1451 = vmul.f32 %v1412, %v1239
        %v1452 = vmul.f32 %v1412, %v1242
        %v1453 = vmul.f32 %v1416, %v1247
        %v1454 = vmul.f32 %v1416, %v1250
        %v1455 = vmul.f32 %v1416, %v1255
        %v1456 = vmul.f32 %v1416, %v1258
        %v1457 = vmul.f32 %v1420, %v1263
        %v1458 = vmul.f32 %v1420, %v1266
        %v1459 = vmul.f32 %v1420, %v1271
        %v1460 = vmul.f32 %v1420, %v1274
        %v1461 = vpack.c.bf16 %v1430, %v1429
        %v1462 = vpack.c.bf16 %v1432, %v1431
        %v1463 = vpack.c.bf16 %v1434, %v1433
        %v1464 = vpack.c.bf16 %v1436, %v1435
        %v1465 = vpack.c.bf16 %v1438, %v1437
        %v1466 = vpack.c.bf16 %v1440, %v1439
        %v1467 = vpack.c.bf16 %v1442, %v1441
        %v1468 = vpack.c.bf16 %v1444, %v1443
        %v1469 = vpack.c.bf16 %v1446, %v1445
        %v1470 = vpack.c.bf16 %v1448, %v1447
        %v1471 = vpack.c.bf16 %v1450, %v1449
        %v1472 = vpack.c.bf16 %v1452, %v1451
        %v1473 = vpack.c.bf16 %v1454, %v1453
        %v1474 = vpack.c.bf16 %v1456, %v1455
        %v1475 = vpack.c.bf16 %v1458, %v1457
        %v1476 = vpack.c.bf16 %v1460, %v1459
        %v1478 = vsel %vm649, %v1461, 0
        %v1481 = vsel %vm649, %v1462, 0
        %v1484 = vsel %vm649, %v1463, 0
        %v1487 = vsel %vm649, %v1464, 0
        %v1490 = vsel %vm649, %v1465, 0
        %v1493 = vsel %vm649, %v1466, 0
        %v1496 = vsel %vm649, %v1467, 0
        %v1499 = vsel %vm649, %v1468, 0
        %v1502 = vsel %vm649, %v1469, 0
        %v1505 = vsel %vm649, %v1470, 0
        %v1508 = vsel %vm649, %v1471, 0
        %v1511 = vsel %vm649, %v1472, 0
        %v1514 = vsel %vm649, %v1473, 0
        %v1517 = vsel %vm649, %v1474, 0
        %v1520 = vsel %vm649, %v1475, 0
        %v1523 = vsel %vm649, %v1476, 0
        %1525 = vmatprep.subr.bf16.mxu0 0
        %1526 = vmatpush1.bf16.msra.mxu0 %v1292
        %1527 = vmatprep.subr.bf16.mxu0 0
        %1528 = vmatpush1.bf16.msra.mxu0 %v1293
        %1529 = vmatprep.subr.bf16.mxu0 0
        %1530 = vmatpush1.bf16.msra.mxu0 0
        %1531 = vmatprep.subr.bf16.mxu0 0
        %1532 = vmatpush1.bf16.msra.mxu0 0
        %1533 = vmatprep.subr.bf16.mxu0 0
        %1534 = vmatpush1.bf16.msra.mxu0 0
        %1535 = vmatprep.subr.bf16.mxu0 0
        %1536 = vmatpush1.bf16.msra.mxu0 0
        %1537 = vmatprep.subr.bf16.mxu0 0
        %1538 = vmatpush1.bf16.msra.mxu0 0
        %1539 = vmatprep.subr.bf16.mxu0 0
        %1540 = vmatpush1.bf16.msra.mxu0 0
        %1541 = vmatprep.subr.bf16.mxu0 0
        %1542 = vmatpush1.bf16.msra.mxu0 0
        %1543 = vmatprep.subr.bf16.mxu0 0
        %1544 = vmatpush1.bf16.msra.mxu0 0
        %1545 = vmatprep.subr.bf16.mxu0 0
        %1546 = vmatpush1.bf16.msra.mxu0 0
        %1547 = vmatprep.subr.bf16.mxu0 0
        %1548 = vmatpush1.bf16.msra.mxu0 0
        %1549 = vmatprep.subr.bf16.mxu0 0
        %1550 = vmatpush1.bf16.msra.mxu0 0
        %1551 = vmatprep.subr.bf16.mxu0 0
        %1552 = vmatpush1.bf16.msra.mxu0 0
        %1553 = vmatprep.subr.bf16.mxu0 0
        %1554 = vmatpush1.bf16.msra.mxu0 0
        %1555 = vmatprep.subr.bf16.mxu0 0
        %1556 = vmatpush1.bf16.msra.mxu0 0
        %1557 = vmatprep.mubr.bf16.mxu0 0
        %1558 = vmatmul.mubr.bf16.gmra.mrb[0].mxu0 %v1478
        %v1559 = vpop.f32.mrb[0].mxu0
        %v1560 = vadd.f32 0.0, %v1559
        %v1561 = vpop.f32.mrb[0].mxu0
        %v1562 = vpop.f32.mrb[0].mxu0
        %v1563 = vadd.f32 0.0, %v1562
        %v1564 = vpop.f32.mrb[0].mxu0
        %1565 = vmatprep.mubr.bf16.mxu0 0
        %1566 = vmatmul.mubr.bf16.gmra.mrb[0].mxu0 %v1481
        %v1567 = vpop.f32.mrb[0].mxu0
        %v1568 = vadd.f32 0.0, %v1567
        %v1569 = vpop.f32.mrb[0].mxu0
        %v1570 = vpop.f32.mrb[0].mxu0
        %v1571 = vadd.f32 0.0, %v1570
        %v1572 = vpop.f32.mrb[0].mxu0
        %1573 = vmatprep.mubr.bf16.mxu0 0
        %1574 = vmatmul.mubr.bf16.gmra.mrb[0].mxu0 %v1484
        %v1575 = vpop.f32.mrb[0].mxu0
        %v1576 = vadd.f32 0.0, %v1575
        %v1577 = vpop.f32.mrb[0].mxu0
        %v1578 = vpop.f32.mrb[0].mxu0
        %v1579 = vadd.f32 0.0, %v1578
        %v1580 = vpop.f32.mrb[0].mxu0
        %1581 = vmatprep.mubr.bf16.mxu0 0
        %1582 = vmatmul.mubr.bf16.gmra.mrb[0].mxu0 %v1487
        %v1583 = vpop.f32.mrb[0].mxu0
        %v1584 = vadd.f32 0.0, %v1583
        %v1585 = vpop.f32.mrb[0].mxu0
        %v1586 = vpop.f32.mrb[0].mxu0
        %v1587 = vadd.f32 0.0, %v1586
        %v1588 = vpop.f32.mrb[0].mxu0
        %1589 = vmatprep.mubr.bf16.mxu0 0
        %1590 = vmatmul.mubr.bf16.gmra.mrb[0].mxu0 %v1490
        %v1591 = vpop.f32.mrb[0].mxu0
        %v1592 = vadd.f32 0.0, %v1591
        %v1593 = vpop.f32.mrb[0].mxu0
        %v1594 = vpop.f32.mrb[0].mxu0
        %v1595 = vadd.f32 0.0, %v1594
        %v1596 = vpop.f32.mrb[0].mxu0
        %1597 = vmatprep.mubr.bf16.mxu0 0
        %1598 = vmatmul.mubr.bf16.gmra.mrb[0].mxu0 %v1493
        %v1599 = vpop.f32.mrb[0].mxu0
        %v1600 = vadd.f32 0.0, %v1599
        %v1601 = vpop.f32.mrb[0].mxu0
        %v1602 = vpop.f32.mrb[0].mxu0
        %v1603 = vadd.f32 0.0, %v1602
        %v1604 = vpop.f32.mrb[0].mxu0
        %1605 = vmatprep.mubr.bf16.mxu0 0
        %1606 = vmatmul.mubr.bf16.gmra.mrb[0].mxu0 %v1496
        %v1607 = vpop.f32.mrb[0].mxu0
        %v1608 = vadd.f32 0.0, %v1607
        %v1609 = vpop.f32.mrb[0].mxu0
        %v1610 = vpop.f32.mrb[0].mxu0
        %v1611 = vadd.f32 0.0, %v1610
        %v1612 = vpop.f32.mrb[0].mxu0
        %1613 = vmatprep.mubr.bf16.mxu0 0
        %1614 = vmatmul.mubr.bf16.gmra.mrb[0].mxu0 %v1499
        %v1615 = vpop.f32.mrb[0].mxu0
        %v1616 = vadd.f32 0.0, %v1615
        %v1617 = vpop.f32.mrb[0].mxu0
        %v1618 = vpop.f32.mrb[0].mxu0
        %v1619 = vadd.f32 0.0, %v1618
        %v1620 = vpop.f32.mrb[0].mxu0
        %1621 = vmatprep.mubr.bf16.mxu0 0
        %1622 = vmatmul.mubr.bf16.gmra.mrb[0].mxu0 %v1502
        %v1623 = vpop.f32.mrb[0].mxu0
        %v1624 = vadd.f32 0.0, %v1623
        %v1625 = vpop.f32.mrb[0].mxu0
        %v1626 = vpop.f32.mrb[0].mxu0
        %v1627 = vadd.f32 0.0, %v1626
        %v1628 = vpop.f32.mrb[0].mxu0
        %1629 = vmatprep.mubr.bf16.mxu0 0
        %1630 = vmatmul.mubr.bf16.gmra.mrb[0].mxu0 %v1505
        %v1631 = vpop.f32.mrb[0].mxu0
        %v1632 = vadd.f32 0.0, %v1631
        %v1633 = vpop.f32.mrb[0].mxu0
        %v1634 = vpop.f32.mrb[0].mxu0
        %v1635 = vadd.f32 0.0, %v1634
        %v1636 = vpop.f32.mrb[0].mxu0
        %1637 = vmatprep.mubr.bf16.mxu0 0
        %1638 = vmatmul.mubr.bf16.gmra.mrb[0].mxu0 %v1508
        %v1639 = vpop.f32.mrb[0].mxu0
        %v1640 = vadd.f32 0.0, %v1639
        %v1641 = vpop.f32.mrb[0].mxu0
        %v1642 = vpop.f32.mrb[0].mxu0
        %v1643 = vadd.f32 0.0, %v1642
        %v1644 = vpop.f32.mrb[0].mxu0
        %1645 = vmatprep.mubr.bf16.mxu0 0
        %1646 = vmatmul.mubr.bf16.gmra.mrb[0].mxu0 %v1511
        %v1647 = vpop.f32.mrb[0].mxu0
        %v1648 = vadd.f32 0.0, %v1647
        %v1649 = vpop.f32.mrb[0].mxu0
        %v1650 = vpop.f32.mrb[0].mxu0
        %v1651 = vadd.f32 0.0, %v1650
        %v1652 = vpop.f32.mrb[0].mxu0
        %1653 = vmatprep.mubr.bf16.mxu0 0
        %1654 = vmatmul.mubr.bf16.gmra.mrb[0].mxu0 %v1514
        %v1655 = vpop.f32.mrb[0].mxu0
        %v1656 = vadd.f32 0.0, %v1655
        %v1657 = vpop.f32.mrb[0].mxu0
        %v1658 = vpop.f32.mrb[0].mxu0
        %v1659 = vadd.f32 0.0, %v1658
        %v1660 = vpop.f32.mrb[0].mxu0
        %1661 = vmatprep.mubr.bf16.mxu0 0
        %1662 = vmatmul.mubr.bf16.gmra.mrb[0].mxu0 %v1517
        %v1663 = vpop.f32.mrb[0].mxu0
        %v1664 = vadd.f32 0.0, %v1663
        %v1665 = vpop.f32.mrb[0].mxu0
        %v1666 = vpop.f32.mrb[0].mxu0
        %v1667 = vadd.f32 0.0, %v1666
        %v1668 = vpop.f32.mrb[0].mxu0
        %1669 = vmatprep.mubr.bf16.mxu0 0
        %1670 = vmatmul.mubr.bf16.gmra.mrb[0].mxu0 %v1520
        %v1671 = vpop.f32.mrb[0].mxu0
        %v1672 = vadd.f32 0.0, %v1671
        %v1673 = vpop.f32.mrb[0].mxu0
        %v1674 = vpop.f32.mrb[0].mxu0
        %v1675 = vadd.f32 0.0, %v1674
        %v1676 = vpop.f32.mrb[0].mxu0
        %1677 = vmatprep.mubr.bf16.mxu0 0
        %1678 = vmatmul.mubr.bf16.gmra.mrb[0].mxu0 %v1523
        %v1679 = vpop.f32.mrb[0].mxu0
        %v1680 = vadd.f32 0.0, %v1679
        %v1681 = vpop.f32.mrb[0].mxu0
        %v1682 = vpop.f32.mrb[0].mxu0
        %v1683 = vadd.f32 0.0, %v1682
        %v1684 = vpop.f32.mrb[0].mxu0
        %1685 = vdwg.mxu0
        %v1686 = vld [vmem:[#allocation8] sm:$0xff]
        %v1687 = vld [vmem:[#allocation8 + $0x8] sm:$0xff]
        %v1688 = vld [vmem:[#allocation8 + $0x10] sm:$0xff]
        %v1689 = vld [vmem:[#allocation8 + $0x18] sm:$0xff]
        %1691 = vset.pattern.permute.xlu0 0
        %1692 = vperm.xlu0 %1691, %v1686
        %v1693 = vpop.permute.xlu0 %1692
        %1696 = vset.pattern.permute.xlu0 0
        %1697 = vperm.xlu0 %1696, %v1687
        %v1698 = vpop.permute.xlu0 %1697
        %1701 = vset.pattern.permute.xlu0 0
        %1702 = vperm.xlu0 %1701, %v1688
        %v1703 = vpop.permute.xlu0 %1702
        %1706 = vset.pattern.permute.xlu0 0
        %1707 = vperm.xlu0 %1706, %v1689
        %v1708 = vpop.permute.xlu0 %1707
        %v1710 = vadd.f32 %v1560, %v1693
        %v1711 = vadd.f32 %v1563, %v1698
        %v1712 = vadd.f32 %v1568, %v1703
        %v1713 = vadd.f32 %v1571, %v1708
        %v1714 = vadd.f32 %v1576, %v1693
        %v1715 = vadd.f32 %v1579, %v1698
        %v1716 = vadd.f32 %v1584, %v1703
        %v1717 = vadd.f32 %v1587, %v1708
        %v1718 = vadd.f32 %v1592, %v1693
        %v1719 = vadd.f32 %v1595, %v1698
        %v1720 = vadd.f32 %v1600, %v1703
        %v1721 = vadd.f32 %v1603, %v1708
        %v1722 = vadd.f32 %v1608, %v1693
        %v1723 = vadd.f32 %v1611, %v1698
        %v1724 = vadd.f32 %v1616, %v1703
        %v1725 = vadd.f32 %v1619, %v1708
        %v1726 = vadd.f32 %v1624, %v1693
        %v1727 = vadd.f32 %v1627, %v1698
        %v1728 = vadd.f32 %v1632, %v1703
        %v1729 = vadd.f32 %v1635, %v1708
        %v1730 = vadd.f32 %v1640, %v1693
        %v1731 = vadd.f32 %v1643, %v1698
        %v1732 = vadd.f32 %v1648, %v1703
        %v1733 = vadd.f32 %v1651, %v1708
        %v1734 = vadd.f32 %v1656, %v1693
        %v1735 = vadd.f32 %v1659, %v1698
        %v1736 = vadd.f32 %v1664, %v1703
        %v1737 = vadd.f32 %v1667, %v1708
        %v1738 = vadd.f32 %v1672, %v1693
        %v1739 = vadd.f32 %v1675, %v1698
        %v1740 = vadd.f32 %v1680, %v1703
        %v1741 = vadd.f32 %v1683, %v1708
        %vm1742 = vcmask 31744
        %v1743 = vsel %vm1742, %v1710, -inf
        %v1744 = vsel %vm1742, %v1711, -inf
        %v1745 = vmax.f32 %v1743, %v1744
        %v1746 = vsel %vm1742, %v1712, -inf
        %v1747 = vmax.f32 %v1745, %v1746
        %v1748 = vsel %vm1742, %v1713, -inf
        %v1749 = vmax.f32 %v1747, %v1748
        %v1750 = vrot.slane %v1749, 4
        %v1751 = vmax.f32 %v1749, %v1750
        %v1752 = vrot.slane %v1751, 2
        %v1753 = vmax.f32 %v1751, %v1752
        %v1754 = vrot.slane %v1753, 1
        %v1755 = vmax.f32 %v1753, %v1754
        %v1756 = vsel %vm1742, %v1714, -inf
        %v1757 = vsel %vm1742, %v1715, -inf
        %v1758 = vmax.f32 %v1756, %v1757
        %v1759 = vsel %vm1742, %v1716, -inf
        %v1760 = vmax.f32 %v1758, %v1759
        %v1761 = vsel %vm1742, %v1717, -inf
        %v1762 = vmax.f32 %v1760, %v1761
        %v1763 = vrot.slane %v1762, 4
        %v1764 = vmax.f32 %v1762, %v1763
        %v1765 = vrot.slane %v1764, 2
        %v1766 = vmax.f32 %v1764, %v1765
        %v1767 = vrot.slane %v1766, 1
        %v1768 = vmax.f32 %v1766, %v1767
        %v1769 = vsel %vm1742, %v1718, -inf
        %v1770 = vsel %vm1742, %v1719, -inf
        %v1771 = vmax.f32 %v1769, %v1770
        %v1772 = vsel %vm1742, %v1720, -inf
        %v1773 = vmax.f32 %v1771, %v1772
        %v1774 = vsel %vm1742, %v1721, -inf
        %v1775 = vmax.f32 %v1773, %v1774
        %v1776 = vrot.slane %v1775, 4
        %v1777 = vmax.f32 %v1775, %v1776
        %v1778 = vrot.slane %v1777, 2
        %v1779 = vmax.f32 %v1777, %v1778
        %v1780 = vrot.slane %v1779, 1
        %v1781 = vmax.f32 %v1779, %v1780
        %v1782 = vsel %vm1742, %v1722, -inf
        %v1783 = vsel %vm1742, %v1723, -inf
        %v1784 = vmax.f32 %v1782, %v1783
        %v1785 = vsel %vm1742, %v1724, -inf
        %v1786 = vmax.f32 %v1784, %v1785
        %v1787 = vsel %vm1742, %v1725, -inf
        %v1788 = vmax.f32 %v1786, %v1787
        %v1789 = vrot.slane %v1788, 4
        %v1790 = vmax.f32 %v1788, %v1789
        %v1791 = vrot.slane %v1790, 2
        %v1792 = vmax.f32 %v1790, %v1791
        %v1793 = vrot.slane %v1792, 1
        %v1794 = vmax.f32 %v1792, %v1793
        %v1795 = vsel %vm1742, %v1726, -inf
        %v1796 = vsel %vm1742, %v1727, -inf
        %v1797 = vmax.f32 %v1795, %v1796
        %v1798 = vsel %vm1742, %v1728, -inf
        %v1799 = vmax.f32 %v1797, %v1798
        %v1800 = vsel %vm1742, %v1729, -inf
        %v1801 = vmax.f32 %v1799, %v1800
        %v1802 = vrot.slane %v1801, 4
        %v1803 = vmax.f32 %v1801, %v1802
        %v1804 = vrot.slane %v1803, 2
        %v1805 = vmax.f32 %v1803, %v1804
        %v1806 = vrot.slane %v1805, 1
        %v1807 = vmax.f32 %v1805, %v1806
        %v1808 = vsel %vm1742, %v1730, -inf
        %v1809 = vsel %vm1742, %v1731, -inf
        %v1810 = vmax.f32 %v1808, %v1809
        %v1811 = vsel %vm1742, %v1732, -inf
        %v1812 = vmax.f32 %v1810, %v1811
        %v1813 = vsel %vm1742, %v1733, -inf
        %v1814 = vmax.f32 %v1812, %v1813
        %v1815 = vrot.slane %v1814, 4
        %v1816 = vmax.f32 %v1814, %v1815
        %v1817 = vrot.slane %v1816, 2
        %v1818 = vmax.f32 %v1816, %v1817
        %v1819 = vrot.slane %v1818, 1
        %v1820 = vmax.f32 %v1818, %v1819
        %v1821 = vsel %vm1742, %v1734, -inf
        %v1822 = vsel %vm1742, %v1735, -inf
        %v1823 = vmax.f32 %v1821, %v1822
        %v1824 = vsel %vm1742, %v1736, -inf
        %v1825 = vmax.f32 %v1823, %v1824
        %v1826 = vsel %vm1742, %v1737, -inf
        %v1827 = vmax.f32 %v1825, %v1826
        %v1828 = vrot.slane %v1827, 4
        %v1829 = vmax.f32 %v1827, %v1828
        %v1830 = vrot.slane %v1829, 2
        %v1831 = vmax.f32 %v1829, %v1830
        %v1832 = vrot.slane %v1831, 1
        %v1833 = vmax.f32 %v1831, %v1832
        %v1834 = vsel %vm1742, %v1738, -inf
        %v1835 = vsel %vm1742, %v1739, -inf
        %v1836 = vmax.f32 %v1834, %v1835
        %v1837 = vsel %vm1742, %v1740, -inf
        %v1838 = vmax.f32 %v1836, %v1837
        %v1839 = vsel %vm1742, %v1741, -inf
        %v1840 = vmax.f32 %v1838, %v1839
        %v1841 = vrot.slane %v1840, 4
        %v1842 = vmax.f32 %v1840, %v1841
        %v1843 = vrot.slane %v1842, 2
        %v1844 = vmax.f32 %v1842, %v1843
        %v1845 = vrot.slane %v1844, 1
        %v1846 = vmax.f32 %v1844, %v1845
        %v1855 = vsel %vm849, %v1768, %v1755
        %v1856 = vsel %vm852, %v1781, %v1855
        %v1857 = vsel %vm855, %v1794, %v1856
        %v1858 = vsel %vm858, %v1807, %v1857
        %v1859 = vsel %vm861, %v1820, %v1858
        %v1860 = vsel %vm864, %v1833, %v1859
        %v1861 = vsel %vm867, %v1846, %v1860
        %v1863 = vmax.f32 %v1334, %v1861
        %v1864 = vsub.f32 %v1334, %v1863
        %v1865 = vmul.f32 %v1864, 1.442695
        %v1866 = vpow.pop %v1865
        %v1868 = vcombine.high %v1863, %v1863
        %v1870 = vunpack.c.l.s4 1966171168
        %v1871 = vunpack.c.0.s8 %v1870
        %v1872 = vlaneseq
        %v1873 = vshrl.u32 %v1872, 7
        %v1874 = vsub.s32 %v1871, %v1873
        %v1875 = vrot.slane %v1863, %v1874
        %v1877 = vunpack.c.l.s4 1966171168
        %v1878 = vunpack.c.0.s8 %v1877
        %v1879 = vlaneseq
        %v1880 = vshrl.u32 %v1879, 7
        %v1881 = vsub.s32 %v1878, %v1880
        %v1882 = vrot.slane %v1868, %v1881
        %v1883 = vcombine.high %v1875, %v1875
        %v1884 = vcombine.high %v1882, %v1882
        %v1886 = vunpack.c.l.s4 1966171168
        %v1887 = vunpack.c.0.s8 %v1886
        %v1888 = vlaneseq
        %v1889 = vshrl.u32 %v1888, 7
        %v1890 = vsub.s32 %v1887, %v1889
        %v1891 = vrot.slane %v1875, %v1890
        %v1893 = vunpack.c.l.s4 1966171168
        %v1894 = vunpack.c.0.s8 %v1893
        %v1895 = vlaneseq
        %v1896 = vshrl.u32 %v1895, 7
        %v1897 = vsub.s32 %v1894, %v1896
        %v1898 = vrot.slane %v1882, %v1897
        %v1900 = vunpack.c.l.s4 1966171168
        %v1901 = vunpack.c.0.s8 %v1900
        %v1902 = vlaneseq
        %v1903 = vshrl.u32 %v1902, 7
        %v1904 = vsub.s32 %v1901, %v1903
        %v1905 = vrot.slane %v1883, %v1904
        %v1907 = vunpack.c.l.s4 1966171168
        %v1908 = vunpack.c.0.s8 %v1907
        %v1909 = vlaneseq
        %v1910 = vshrl.u32 %v1909, 7
        %v1911 = vsub.s32 %v1908, %v1910
        %v1912 = vrot.slane %v1884, %v1911
        %v1913 = vcombine.high %v1891, %v1891
        %v1914 = vcombine.high %v1898, %v1898
        %v1915 = vcombine.high %v1905, %v1905
        %v1916 = vcombine.high %v1912, %v1912
        %v1917 = vlaneseq
        %v1918 = vshrl.u32 %v1917, 7
        %v1919 = vsub.s32 0, %v1918
        %v1920 = vrot.slane %v1891, %v1919
        %v1921 = vlaneseq
        %v1922 = vshrl.u32 %v1921, 7
        %v1923 = vsub.s32 0, %v1922
        %v1924 = vrot.slane %v1905, %v1923
        %v1925 = vlaneseq
        %v1926 = vshrl.u32 %v1925, 7
        %v1927 = vsub.s32 0, %v1926
        %v1928 = vrot.slane %v1913, %v1927
        %v1929 = vlaneseq
        %v1930 = vshrl.u32 %v1929, 7
        %v1931 = vsub.s32 0, %v1930
        %v1932 = vrot.slane %v1915, %v1931
        %v1933 = vlaneseq
        %v1934 = vshrl.u32 %v1933, 7
        %v1935 = vsub.s32 0, %v1934
        %v1936 = vrot.slane %v1898, %v1935
        %v1937 = vlaneseq
        %v1938 = vshrl.u32 %v1937, 7
        %v1939 = vsub.s32 0, %v1938
        %v1940 = vrot.slane %v1912, %v1939
        %v1941 = vlaneseq
        %v1942 = vshrl.u32 %v1941, 7
        %v1943 = vsub.s32 0, %v1942
        %v1944 = vrot.slane %v1914, %v1943
        %v1945 = vlaneseq
        %v1946 = vshrl.u32 %v1945, 7
        %v1947 = vsub.s32 0, %v1946
        %v1948 = vrot.slane %v1916, %v1947
        %v1957 = vsub.f32 %v1710, %v1920
        %v1958 = vsub.f32 %v1711, %v1920
        %v1959 = vsub.f32 %v1712, %v1920
        %v1960 = vsub.f32 %v1713, %v1920
        %v1961 = vsub.f32 %v1714, %v1924
        %v1962 = vsub.f32 %v1715, %v1924
        %v1963 = vsub.f32 %v1716, %v1924
        %v1964 = vsub.f32 %v1717, %v1924
        %v1965 = vsub.f32 %v1718, %v1928
        %v1966 = vsub.f32 %v1719, %v1928
        %v1967 = vsub.f32 %v1720, %v1928
        %v1968 = vsub.f32 %v1721, %v1928
        %v1969 = vsub.f32 %v1722, %v1932
        %v1970 = vsub.f32 %v1723, %v1932
        %v1971 = vsub.f32 %v1724, %v1932
        %v1972 = vsub.f32 %v1725, %v1932
        %v1973 = vsub.f32 %v1726, %v1936
        %v1974 = vsub.f32 %v1727, %v1936
        %v1975 = vsub.f32 %v1728, %v1936
        %v1976 = vsub.f32 %v1729, %v1936
        %v1977 = vsub.f32 %v1730, %v1940
        %v1978 = vsub.f32 %v1731, %v1940
        %v1979 = vsub.f32 %v1732, %v1940
        %v1980 = vsub.f32 %v1733, %v1940
        %v1981 = vsub.f32 %v1734, %v1944
        %v1982 = vsub.f32 %v1735, %v1944
        %v1983 = vsub.f32 %v1736, %v1944
        %v1984 = vsub.f32 %v1737, %v1944
        %v1985 = vsub.f32 %v1738, %v1948
        %v1986 = vsub.f32 %v1739, %v1948
        %v1987 = vsub.f32 %v1740, %v1948
        %v1988 = vsub.f32 %v1741, %v1948
        %v1989 = vmul.f32 %v1957, 1.442695
        %v1990 = vpow.pop %v1989
        %v1991 = vmul.f32 %v1958, 1.442695
        %v1992 = vpow.pop %v1991
        %v1993 = vmul.f32 %v1959, 1.442695
        %v1994 = vpow.pop %v1993
        %v1995 = vmul.f32 %v1960, 1.442695
        %v1996 = vpow.pop %v1995
        %v1997 = vmul.f32 %v1961, 1.442695
        %v1998 = vpow.pop %v1997
        %v1999 = vmul.f32 %v1962, 1.442695
        %v2000 = vpow.pop %v1999
        %v2001 = vmul.f32 %v1963, 1.442695
        %v2002 = vpow.pop %v2001
        %v2003 = vmul.f32 %v1964, 1.442695
        %v2004 = vpow.pop %v2003
        %v2005 = vmul.f32 %v1965, 1.442695
        %v2006 = vpow.pop %v2005
        %v2007 = vmul.f32 %v1966, 1.442695
        %v2008 = vpow.pop %v2007
        %v2009 = vmul.f32 %v1967, 1.442695
        %v2010 = vpow.pop %v2009
        %v2011 = vmul.f32 %v1968, 1.442695
        %v2012 = vpow.pop %v2011
        %v2013 = vmul.f32 %v1969, 1.442695
        %v2014 = vpow.pop %v2013
        %v2015 = vmul.f32 %v1970, 1.442695
        %v2016 = vpow.pop %v2015
        %v2017 = vmul.f32 %v1971, 1.442695
        %v2018 = vpow.pop %v2017
        %v2019 = vmul.f32 %v1972, 1.442695
        %v2020 = vpow.pop %v2019
        %v2021 = vmul.f32 %v1973, 1.442695
        %v2022 = vpow.pop %v2021
        %v2023 = vmul.f32 %v1974, 1.442695
        %v2024 = vpow.pop %v2023
        %v2025 = vmul.f32 %v1975, 1.442695
        %v2026 = vpow.pop %v2025
        %v2027 = vmul.f32 %v1976, 1.442695
        %v2028 = vpow.pop %v2027
        %v2029 = vmul.f32 %v1977, 1.442695
        %v2030 = vpow.pop %v2029
        %v2031 = vmul.f32 %v1978, 1.442695
        %v2032 = vpow.pop %v2031
        %v2033 = vmul.f32 %v1979, 1.442695
        %v2034 = vpow.pop %v2033
        %v2035 = vmul.f32 %v1980, 1.442695
        %v2036 = vpow.pop %v2035
        %v2037 = vmul.f32 %v1981, 1.442695
        %v2038 = vpow.pop %v2037
        %v2039 = vmul.f32 %v1982, 1.442695
        %v2040 = vpow.pop %v2039
        %v2041 = vmul.f32 %v1983, 1.442695
        %v2042 = vpow.pop %v2041
        %v2043 = vmul.f32 %v1984, 1.442695
        %v2044 = vpow.pop %v2043
        %v2045 = vmul.f32 %v1985, 1.442695
        %v2046 = vpow.pop %v2045
        %v2047 = vmul.f32 %v1986, 1.442695
        %v2048 = vpow.pop %v2047
        %v2049 = vmul.f32 %v1987, 1.442695
        %v2050 = vpow.pop %v2049
        %v2051 = vmul.f32 %v1988, 1.442695
        %v2052 = vpow.pop %v2051
        %v2053 = vsel %vm1742, %v1990, 0.0
        %v2054 = vsel %vm1742, %v1992, 0.0
        %v2055 = vadd.f32 %v2053, %v2054
        %v2056 = vsel %vm1742, %v1994, 0.0
        %v2057 = vadd.f32 %v2055, %v2056
        %v2058 = vsel %vm1742, %v1996, 0.0
        %v2059 = vadd.f32 %v2057, %v2058
        %v2060 = vrot.slane %v2059, 4
        %v2061 = vadd.f32 %v2059, %v2060
        %v2062 = vrot.slane %v2061, 2
        %v2063 = vadd.f32 %v2061, %v2062
        %v2064 = vrot.slane %v2063, 1
        %v2065 = vadd.f32 %v2063, %v2064
        %v2066 = vsel %vm1742, %v1998, 0.0
        %v2067 = vsel %vm1742, %v2000, 0.0
        %v2068 = vadd.f32 %v2066, %v2067
        %v2069 = vsel %vm1742, %v2002, 0.0
        %v2070 = vadd.f32 %v2068, %v2069
        %v2071 = vsel %vm1742, %v2004, 0.0
        %v2072 = vadd.f32 %v2070, %v2071
        %v2073 = vrot.slane %v2072, 4
        %v2074 = vadd.f32 %v2072, %v2073
        %v2075 = vrot.slane %v2074, 2
        %v2076 = vadd.f32 %v2074, %v2075
        %v2077 = vrot.slane %v2076, 1
        %v2078 = vadd.f32 %v2076, %v2077
        %v2079 = vsel %vm1742, %v2006, 0.0
        %v2080 = vsel %vm1742, %v2008, 0.0
        %v2081 = vadd.f32 %v2079, %v2080
        %v2082 = vsel %vm1742, %v2010, 0.0
        %v2083 = vadd.f32 %v2081, %v2082
        %v2084 = vsel %vm1742, %v2012, 0.0
        %v2085 = vadd.f32 %v2083, %v2084
        %v2086 = vrot.slane %v2085, 4
        %v2087 = vadd.f32 %v2085, %v2086
        %v2088 = vrot.slane %v2087, 2
        %v2089 = vadd.f32 %v2087, %v2088
        %v2090 = vrot.slane %v2089, 1
        %v2091 = vadd.f32 %v2089, %v2090
        %v2092 = vsel %vm1742, %v2014, 0.0
        %v2093 = vsel %vm1742, %v2016, 0.0
        %v2094 = vadd.f32 %v2092, %v2093
        %v2095 = vsel %vm1742, %v2018, 0.0
        %v2096 = vadd.f32 %v2094, %v2095
        %v2097 = vsel %vm1742, %v2020, 0.0
        %v2098 = vadd.f32 %v2096, %v2097
        %v2099 = vrot.slane %v2098, 4
        %v2100 = vadd.f32 %v2098, %v2099
        %v2101 = vrot.slane %v2100, 2
        %v2102 = vadd.f32 %v2100, %v2101
        %v2103 = vrot.slane %v2102, 1
        %v2104 = vadd.f32 %v2102, %v2103
        %v2105 = vsel %vm1742, %v2022, 0.0
        %v2106 = vsel %vm1742, %v2024, 0.0
        %v2107 = vadd.f32 %v2105, %v2106
        %v2108 = vsel %vm1742, %v2026, 0.0
        %v2109 = vadd.f32 %v2107, %v2108
        %v2110 = vsel %vm1742, %v2028, 0.0
        %v2111 = vadd.f32 %v2109, %v2110
        %v2112 = vrot.slane %v2111, 4
        %v2113 = vadd.f32 %v2111, %v2112
        %v2114 = vrot.slane %v2113, 2
        %v2115 = vadd.f32 %v2113, %v2114
        %v2116 = vrot.slane %v2115, 1
        %v2117 = vadd.f32 %v2115, %v2116
        %v2118 = vsel %vm1742, %v2030, 0.0
        %v2119 = vsel %vm1742, %v2032, 0.0
        %v2120 = vadd.f32 %v2118, %v2119
        %v2121 = vsel %vm1742, %v2034, 0.0
        %v2122 = vadd.f32 %v2120, %v2121
        %v2123 = vsel %vm1742, %v2036, 0.0
        %v2124 = vadd.f32 %v2122, %v2123
        %v2125 = vrot.slane %v2124, 4
        %v2126 = vadd.f32 %v2124, %v2125
        %v2127 = vrot.slane %v2126, 2
        %v2128 = vadd.f32 %v2126, %v2127
        %v2129 = vrot.slane %v2128, 1
        %v2130 = vadd.f32 %v2128, %v2129
        %v2131 = vsel %vm1742, %v2038, 0.0
        %v2132 = vsel %vm1742, %v2040, 0.0
        %v2133 = vadd.f32 %v2131, %v2132
        %v2134 = vsel %vm1742, %v2042, 0.0
        %v2135 = vadd.f32 %v2133, %v2134
        %v2136 = vsel %vm1742, %v2044, 0.0
        %v2137 = vadd.f32 %v2135, %v2136
        %v2138 = vrot.slane %v2137, 4
        %v2139 = vadd.f32 %v2137, %v2138
        %v2140 = vrot.slane %v2139, 2
        %v2141 = vadd.f32 %v2139, %v2140
        %v2142 = vrot.slane %v2141, 1
        %v2143 = vadd.f32 %v2141, %v2142
        %v2144 = vsel %vm1742, %v2046, 0.0
        %v2145 = vsel %vm1742, %v2048, 0.0
        %v2146 = vadd.f32 %v2144, %v2145
        %v2147 = vsel %vm1742, %v2050, 0.0
        %v2148 = vadd.f32 %v2146, %v2147
        %v2149 = vsel %vm1742, %v2052, 0.0
        %v2150 = vadd.f32 %v2148, %v2149
        %v2151 = vrot.slane %v2150, 4
        %v2152 = vadd.f32 %v2150, %v2151
        %v2153 = vrot.slane %v2152, 2
        %v2154 = vadd.f32 %v2152, %v2153
        %v2155 = vrot.slane %v2154, 1
        %v2156 = vadd.f32 %v2154, %v2155
        %v2165 = vsel %vm849, %v2078, %v2065
        %v2166 = vsel %vm852, %v2091, %v2165
        %v2167 = vsel %vm855, %v2104, %v2166
        %v2168 = vsel %vm858, %v2117, %v2167
        %v2169 = vsel %vm861, %v2130, %v2168
        %v2170 = vsel %vm864, %v2143, %v2169
        %v2171 = vsel %vm867, %v2156, %v2170
        %v2173 = vadd.f32 %v1866, %v2171
        %v2174 = vrcp.pop %v2173
        %v2175 = vmul.f32 %v1866, %v2174
        %v2177 = vcombine.high %v2174, %v2174
        %v2179 = vunpack.c.l.s4 1966171168
        %v2180 = vunpack.c.0.s8 %v2179
        %v2181 = vlaneseq
        %v2182 = vshrl.u32 %v2181, 7
        %v2183 = vsub.s32 %v2180, %v2182
        %v2184 = vrot.slane %v2174, %v2183
        %v2186 = vunpack.c.l.s4 1966171168
        %v2187 = vunpack.c.0.s8 %v2186
        %v2188 = vlaneseq
        %v2189 = vshrl.u32 %v2188, 7
        %v2190 = vsub.s32 %v2187, %v2189
        %v2191 = vrot.slane %v2177, %v2190
        %v2192 = vcombine.high %v2184, %v2184
        %v2193 = vcombine.high %v2191, %v2191
        %v2195 = vunpack.c.l.s4 1966171168
        %v2196 = vunpack.c.0.s8 %v2195
        %v2197 = vlaneseq
        %v2198 = vshrl.u32 %v2197, 7
        %v2199 = vsub.s32 %v2196, %v2198
        %v2200 = vrot.slane %v2184, %v2199
        %v2202 = vunpack.c.l.s4 1966171168
        %v2203 = vunpack.c.0.s8 %v2202
        %v2204 = vlaneseq
        %v2205 = vshrl.u32 %v2204, 7
        %v2206 = vsub.s32 %v2203, %v2205
        %v2207 = vrot.slane %v2191, %v2206
        %v2209 = vunpack.c.l.s4 1966171168
        %v2210 = vunpack.c.0.s8 %v2209
        %v2211 = vlaneseq
        %v2212 = vshrl.u32 %v2211, 7
        %v2213 = vsub.s32 %v2210, %v2212
        %v2214 = vrot.slane %v2192, %v2213
        %v2216 = vunpack.c.l.s4 1966171168
        %v2217 = vunpack.c.0.s8 %v2216
        %v2218 = vlaneseq
        %v2219 = vshrl.u32 %v2218, 7
        %v2220 = vsub.s32 %v2217, %v2219
        %v2221 = vrot.slane %v2193, %v2220
        %v2222 = vcombine.high %v2200, %v2200
        %v2223 = vcombine.high %v2207, %v2207
        %v2224 = vcombine.high %v2214, %v2214
        %v2225 = vcombine.high %v2221, %v2221
        %v2226 = vlaneseq
        %v2227 = vshrl.u32 %v2226, 7
        %v2228 = vsub.s32 0, %v2227
        %v2229 = vrot.slane %v2200, %v2228
        %v2230 = vlaneseq
        %v2231 = vshrl.u32 %v2230, 7
        %v2232 = vsub.s32 0, %v2231
        %v2233 = vrot.slane %v2214, %v2232
        %v2234 = vlaneseq
        %v2235 = vshrl.u32 %v2234, 7
        %v2236 = vsub.s32 0, %v2235
        %v2237 = vrot.slane %v2222, %v2236
        %v2238 = vlaneseq
        %v2239 = vshrl.u32 %v2238, 7
        %v2240 = vsub.s32 0, %v2239
        %v2241 = vrot.slane %v2224, %v2240
        %v2242 = vlaneseq
        %v2243 = vshrl.u32 %v2242, 7
        %v2244 = vsub.s32 0, %v2243
        %v2245 = vrot.slane %v2207, %v2244
        %v2246 = vlaneseq
        %v2247 = vshrl.u32 %v2246, 7
        %v2248 = vsub.s32 0, %v2247
        %v2249 = vrot.slane %v2221, %v2248
        %v2250 = vlaneseq
        %v2251 = vshrl.u32 %v2250, 7
        %v2252 = vsub.s32 0, %v2251
        %v2253 = vrot.slane %v2223, %v2252
        %v2254 = vlaneseq
        %v2255 = vshrl.u32 %v2254, 7
        %v2256 = vsub.s32 0, %v2255
        %v2257 = vrot.slane %v2225, %v2256
        %v2266 = vmul.f32 %v1990, %v2229
        %v2267 = vmul.f32 %v1992, %v2229
        %v2268 = vmul.f32 %v1994, %v2229
        %v2269 = vmul.f32 %v1996, %v2229
        %v2270 = vmul.f32 %v1998, %v2233
        %v2271 = vmul.f32 %v2000, %v2233
        %v2272 = vmul.f32 %v2002, %v2233
        %v2273 = vmul.f32 %v2004, %v2233
        %v2274 = vmul.f32 %v2006, %v2237
        %v2275 = vmul.f32 %v2008, %v2237
        %v2276 = vmul.f32 %v2010, %v2237
        %v2277 = vmul.f32 %v2012, %v2237
        %v2278 = vmul.f32 %v2014, %v2241
        %v2279 = vmul.f32 %v2016, %v2241
        %v2280 = vmul.f32 %v2018, %v2241
        %v2281 = vmul.f32 %v2020, %v2241
        %v2282 = vmul.f32 %v2022, %v2245
        %v2283 = vmul.f32 %v2024, %v2245
        %v2284 = vmul.f32 %v2026, %v2245
        %v2285 = vmul.f32 %v2028, %v2245
        %v2286 = vmul.f32 %v2030, %v2249
        %v2287 = vmul.f32 %v2032, %v2249
        %v2288 = vmul.f32 %v2034, %v2249
        %v2289 = vmul.f32 %v2036, %v2249
        %v2290 = vmul.f32 %v2038, %v2253
        %v2291 = vmul.f32 %v2040, %v2253
        %v2292 = vmul.f32 %v2042, %v2253
        %v2293 = vmul.f32 %v2044, %v2253
        %v2294 = vmul.f32 %v2046, %v2257
        %v2295 = vmul.f32 %v2048, %v2257
        %v2296 = vmul.f32 %v2050, %v2257
        %v2297 = vmul.f32 %v2052, %v2257
        %v2298 = vpack.c.bf16 %v2175, %v2175
        %v2300 = vsel %vm1742, %v2298, 0
        %vm2302 = vcmask 1041408
        %v2304 = vsel %vm2302, %v1281, 0
        %2306 = vmatprep.subr.bf16.mxu0 0
        %2307 = vmatpush1.bf16.msra.mxu0 %v2304
        %2308 = vmatprep.subr.bf16.mxu0 0
        %2309 = vmatpush1.bf16.msra.mxu0 0
        %2310 = vmatprep.subr.bf16.mxu0 0
        %2311 = vmatpush1.bf16.msra.mxu0 0
        %2312 = vmatprep.subr.bf16.mxu0 0
        %2313 = vmatpush1.bf16.msra.mxu0 0
        %2314 = vmatprep.subr.bf16.mxu0 0
        %2315 = vmatpush1.bf16.msra.mxu0 0
        %2316 = vmatprep.subr.bf16.mxu0 0
        %2317 = vmatpush1.bf16.msra.mxu0 0
        %2318 = vmatprep.subr.bf16.mxu0 0
        %2319 = vmatpush1.bf16.msra.mxu0 0
        %2320 = vmatprep.subr.bf16.mxu0 0
        %2321 = vmatpush1.bf16.msra.mxu0 0
        %2322 = vmatprep.subr.bf16.mxu0 0
        %2323 = vmatpush1.bf16.msra.mxu0 0
        %2324 = vmatprep.subr.bf16.mxu0 0
        %2325 = vmatpush1.bf16.msra.mxu0 0
        %2326 = vmatprep.subr.bf16.mxu0 0
        %2327 = vmatpush1.bf16.msra.mxu0 0
        %2328 = vmatprep.subr.bf16.mxu0 0
        %2329 = vmatpush1.bf16.msra.mxu0 0
        %2330 = vmatprep.subr.bf16.mxu0 0
        %2331 = vmatpush1.bf16.msra.mxu0 0
        %2332 = vmatprep.subr.bf16.mxu0 0
        %2333 = vmatpush1.bf16.msra.mxu0 0
        %2334 = vmatprep.subr.bf16.mxu0 0
        %2335 = vmatpush1.bf16.msra.mxu0 0
        %2336 = vmatprep.subr.bf16.mxu0 0
        %2337 = vmatpush1.bf16.msra.mxu0 0
        %2338 = vmatprep.mubr.bf16.mxu0 0
        %2339 = vmatmul.mubr.bf16.gmra.mrb[0].mxu0 %v2300
        %v2340 = vpop.f32.mrb[0].mxu0
        %v2341 = vadd.f32 0.0, %v2340
        %v2342 = vpop.f32.mrb[0].mxu0
        %v2343 = vpop.f32.mrb[0].mxu0
        %v2344 = vpop.f32.mrb[0].mxu0
        %2345 = vdwg.mxu0
        %v2346 = vpack.c.bf16 %v2267, %v2266
        %v2347 = vpack.c.bf16 %v2269, %v2268
        %v2348 = vpack.c.bf16 %v2271, %v2270
        %v2349 = vpack.c.bf16 %v2273, %v2272
        %v2350 = vpack.c.bf16 %v2275, %v2274
        %v2351 = vpack.c.bf16 %v2277, %v2276
        %v2352 = vpack.c.bf16 %v2279, %v2278
        %v2353 = vpack.c.bf16 %v2281, %v2280
        %v2354 = vpack.c.bf16 %v2283, %v2282
        %v2355 = vpack.c.bf16 %v2285, %v2284
        %v2356 = vpack.c.bf16 %v2287, %v2286
        %v2357 = vpack.c.bf16 %v2289, %v2288
        %v2358 = vpack.c.bf16 %v2291, %v2290
        %v2359 = vpack.c.bf16 %v2293, %v2292
        %v2360 = vpack.c.bf16 %v2295, %v2294
        %v2361 = vpack.c.bf16 %v2297, %v2296
        %v2363 = vsel %vm1742, %v2346, 0
        %v2366 = vsel %vm1742, %v2347, 0
        %v2369 = vsel %vm1742, %v2348, 0
        %v2372 = vsel %vm1742, %v2349, 0
        %v2375 = vsel %vm1742, %v2350, 0
        %v2378 = vsel %vm1742, %v2351, 0
        %v2381 = vsel %vm1742, %v2352, 0
        %v2384 = vsel %vm1742, %v2353, 0
        %v2387 = vsel %vm1742, %v2354, 0
        %v2390 = vsel %vm1742, %v2355, 0
        %v2393 = vsel %vm1742, %v2356, 0
        %v2396 = vsel %vm1742, %v2357, 0
        %v2399 = vsel %vm1742, %v2358, 0
        %v2402 = vsel %vm1742, %v2359, 0
        %v2405 = vsel %vm1742, %v2360, 0
        %v2408 = vsel %vm1742, %v2361, 0
        %2410 = vmatprep.subr.bf16.mxu0 0
        %2411 = vmatpush1.bf16.msra.mxu0 %v2304
        %2412 = vmatprep.subr.bf16.mxu0 0
        %2413 = vmatpush1.bf16.msra.mxu0 0
        %2414 = vmatprep.subr.bf16.mxu0 0
        %2415 = vmatpush1.bf16.msra.mxu0 0
        %2416 = vmatprep.subr.bf16.mxu0 0
        %2417 = vmatpush1.bf16.msra.mxu0 0
        %2418 = vmatprep.subr.bf16.mxu0 0
        %2419 = vmatpush1.bf16.msra.mxu0 0
        %2420 = vmatprep.subr.bf16.mxu0 0
        %2421 = vmatpush1.bf16.msra.mxu0 0
        %2422 = vmatprep.subr.bf16.mxu0 0
        %2423 = vmatpush1.bf16.msra.mxu0 0
        %2424 = vmatprep.subr.bf16.mxu0 0
        %2425 = vmatpush1.bf16.msra.mxu0 0
        %2426 = vmatprep.subr.bf16.mxu0 0
        %2427 = vmatpush1.bf16.msra.mxu0 0
        %2428 = vmatprep.subr.bf16.mxu0 0
        %2429 = vmatpush1.bf16.msra.mxu0 0
        %2430 = vmatprep.subr.bf16.mxu0 0
        %2431 = vmatpush1.bf16.msra.mxu0 0
        %2432 = vmatprep.subr.bf16.mxu0 0
        %2433 = vmatpush1.bf16.msra.mxu0 0
        %2434 = vmatprep.subr.bf16.mxu0 0
        %2435 = vmatpush1.bf16.msra.mxu0 0
        %2436 = vmatprep.subr.bf16.mxu0 0
        %2437 = vmatpush1.bf16.msra.mxu0 0
        %2438 = vmatprep.subr.bf16.mxu0 0
        %2439 = vmatpush1.bf16.msra.mxu0 0
        %2440 = vmatprep.subr.bf16.mxu0 0
        %2441 = vmatpush1.bf16.msra.mxu0 0
        %2442 = vmatprep.mubr.bf16.mxu0 0
        %2443 = vmatmul.mubr.bf16.gmra.mrb[0].mxu0 %v2363
        %v2444 = vpop.f32.mrb[0].mxu0
        %v2445 = vadd.f32 0.0, %v2444
        %v2446 = vpop.f32.mrb[0].mxu0
        %v2447 = vpop.f32.mrb[0].mxu0
        %v2448 = vadd.f32 0.0, %v2447
        %v2449 = vpop.f32.mrb[0].mxu0
        %2450 = vmatprep.mubr.bf16.mxu0 0
        %2451 = vmatmul.mubr.bf16.gmra.mrb[0].mxu0 %v2366
        %v2452 = vpop.f32.mrb[0].mxu0
        %v2453 = vadd.f32 0.0, %v2452
        %v2454 = vpop.f32.mrb[0].mxu0
        %v2455 = vpop.f32.mrb[0].mxu0
        %v2456 = vadd.f32 0.0, %v2455
        %v2457 = vpop.f32.mrb[0].mxu0
        %2458 = vmatprep.mubr.bf16.mxu0 0
        %2459 = vmatmul.mubr.bf16.gmra.mrb[0].mxu0 %v2369
        %v2460 = vpop.f32.mrb[0].mxu0
        %v2461 = vadd.f32 0.0, %v2460
        %v2462 = vpop.f32.mrb[0].mxu0
        %v2463 = vpop.f32.mrb[0].mxu0
        %v2464 = vadd.f32 0.0, %v2463
        %v2465 = vpop.f32.mrb[0].mxu0
        %2466 = vmatprep.mubr.bf16.mxu0 0
        %2467 = vmatmul.mubr.bf16.gmra.mrb[0].mxu0 %v2372
        %v2468 = vpop.f32.mrb[0].mxu0
        %v2469 = vadd.f32 0.0, %v2468
        %v2470 = vpop.f32.mrb[0].mxu0
        %v2471 = vpop.f32.mrb[0].mxu0
        %v2472 = vadd.f32 0.0, %v2471
        %v2473 = vpop.f32.mrb[0].mxu0
        %2474 = vmatprep.mubr.bf16.mxu0 0
        %2475 = vmatmul.mubr.bf16.gmra.mrb[0].mxu0 %v2375
        %v2476 = vpop.f32.mrb[0].mxu0
        %v2477 = vadd.f32 0.0, %v2476
        %v2478 = vpop.f32.mrb[0].mxu0
        %v2479 = vpop.f32.mrb[0].mxu0
        %v2480 = vadd.f32 0.0, %v2479
        %v2481 = vpop.f32.mrb[0].mxu0
        %2482 = vmatprep.mubr.bf16.mxu0 0
        %2483 = vmatmul.mubr.bf16.gmra.mrb[0].mxu0 %v2378
        %v2484 = vpop.f32.mrb[0].mxu0
        %v2485 = vadd.f32 0.0, %v2484
        %v2486 = vpop.f32.mrb[0].mxu0
        %v2487 = vpop.f32.mrb[0].mxu0
        %v2488 = vadd.f32 0.0, %v2487
        %v2489 = vpop.f32.mrb[0].mxu0
        %2490 = vmatprep.mubr.bf16.mxu0 0
        %2491 = vmatmul.mubr.bf16.gmra.mrb[0].mxu0 %v2381
        %v2492 = vpop.f32.mrb[0].mxu0
        %v2493 = vadd.f32 0.0, %v2492
        %v2494 = vpop.f32.mrb[0].mxu0
        %v2495 = vpop.f32.mrb[0].mxu0
        %v2496 = vadd.f32 0.0, %v2495
        %v2497 = vpop.f32.mrb[0].mxu0
        %2498 = vmatprep.mubr.bf16.mxu0 0
        %2499 = vmatmul.mubr.bf16.gmra.mrb[0].mxu0 %v2384
        %v2500 = vpop.f32.mrb[0].mxu0
        %v2501 = vadd.f32 0.0, %v2500
        %v2502 = vpop.f32.mrb[0].mxu0
        %v2503 = vpop.f32.mrb[0].mxu0
        %v2504 = vadd.f32 0.0, %v2503
        %v2505 = vpop.f32.mrb[0].mxu0
        %2506 = vmatprep.mubr.bf16.mxu0 0
        %2507 = vmatmul.mubr.bf16.gmra.mrb[0].mxu0 %v2387
        %v2508 = vpop.f32.mrb[0].mxu0
        %v2509 = vadd.f32 0.0, %v2508
        %v2510 = vpop.f32.mrb[0].mxu0
        %v2511 = vpop.f32.mrb[0].mxu0
        %v2512 = vadd.f32 0.0, %v2511
        %v2513 = vpop.f32.mrb[0].mxu0
        %2514 = vmatprep.mubr.bf16.mxu0 0
        %2515 = vmatmul.mubr.bf16.gmra.mrb[0].mxu0 %v2390
        %v2516 = vpop.f32.mrb[0].mxu0
        %v2517 = vadd.f32 0.0, %v2516
        %v2518 = vpop.f32.mrb[0].mxu0
        %v2519 = vpop.f32.mrb[0].mxu0
        %v2520 = vadd.f32 0.0, %v2519
        %v2521 = vpop.f32.mrb[0].mxu0
        %2522 = vmatprep.mubr.bf16.mxu0 0
        %2523 = vmatmul.mubr.bf16.gmra.mrb[0].mxu0 %v2393
        %v2524 = vpop.f32.mrb[0].mxu0
        %v2525 = vadd.f32 0.0, %v2524
        %v2526 = vpop.f32.mrb[0].mxu0
        %v2527 = vpop.f32.mrb[0].mxu0
        %v2528 = vadd.f32 0.0, %v2527
        %v2529 = vpop.f32.mrb[0].mxu0
        %2530 = vmatprep.mubr.bf16.mxu0 0
        %2531 = vmatmul.mubr.bf16.gmra.mrb[0].mxu0 %v2396
        %v2532 = vpop.f32.mrb[0].mxu0
        %v2533 = vadd.f32 0.0, %v2532
        %v2534 = vpop.f32.mrb[0].mxu0
        %v2535 = vpop.f32.mrb[0].mxu0
        %v2536 = vadd.f32 0.0, %v2535
        %v2537 = vpop.f32.mrb[0].mxu0
        %2538 = vmatprep.mubr.bf16.mxu0 0
        %2539 = vmatmul.mubr.bf16.gmra.mrb[0].mxu0 %v2399
        %v2540 = vpop.f32.mrb[0].mxu0
        %v2541 = vadd.f32 0.0, %v2540
        %v2542 = vpop.f32.mrb[0].mxu0
        %v2543 = vpop.f32.mrb[0].mxu0
        %v2544 = vadd.f32 0.0, %v2543
        %v2545 = vpop.f32.mrb[0].mxu0
        %2546 = vmatprep.mubr.bf16.mxu0 0
        %2547 = vmatmul.mubr.bf16.gmra.mrb[0].mxu0 %v2402
        %v2548 = vpop.f32.mrb[0].mxu0
        %v2549 = vadd.f32 0.0, %v2548
        %v2550 = vpop.f32.mrb[0].mxu0
        %v2551 = vpop.f32.mrb[0].mxu0
        %v2552 = vadd.f32 0.0, %v2551
        %v2553 = vpop.f32.mrb[0].mxu0
        %2554 = vmatprep.mubr.bf16.mxu0 0
        %2555 = vmatmul.mubr.bf16.gmra.mrb[0].mxu0 %v2405
        %v2556 = vpop.f32.mrb[0].mxu0
        %v2557 = vadd.f32 0.0, %v2556
        %v2558 = vpop.f32.mrb[0].mxu0
        %v2559 = vpop.f32.mrb[0].mxu0
        %v2560 = vadd.f32 0.0, %v2559
        %v2561 = vpop.f32.mrb[0].mxu0
        %2562 = vmatprep.mubr.bf16.mxu0 0
        %2563 = vmatmul.mubr.bf16.gmra.mrb[0].mxu0 %v2408
        %v2564 = vpop.f32.mrb[0].mxu0
        %v2565 = vadd.f32 0.0, %v2564
        %v2566 = vpop.f32.mrb[0].mxu0
        %v2567 = vpop.f32.mrb[0].mxu0
        %v2568 = vadd.f32 0.0, %v2567
        %v2569 = vpop.f32.mrb[0].mxu0
        %2570 = vdwg.mxu0
        %2572 = vrot.lane.b32.xlu0 %v983, 96
        %v2573 = vpop.permute.xlu0 %2572
        %v2575 = vmul.f32 %v2341, %v2573
        %2608 = vrot.lane.b32.xlu0 %v1151, 96
        %v2609 = vpop.permute.xlu0 %2608
        %2610 = vrot.lane.b32.xlu0 %v1154, 96
        %v2611 = vpop.permute.xlu0 %2610
        %2612 = vrot.lane.b32.xlu0 %v1159, 96
        %v2613 = vpop.permute.xlu0 %2612
        %2614 = vrot.lane.b32.xlu0 %v1162, 96
        %v2615 = vpop.permute.xlu0 %2614
        %2616 = vrot.lane.b32.xlu0 %v1167, 96
        %v2617 = vpop.permute.xlu0 %2616
        %2618 = vrot.lane.b32.xlu0 %v1170, 96
        %v2619 = vpop.permute.xlu0 %2618
        %2620 = vrot.lane.b32.xlu0 %v1175, 96
        %v2621 = vpop.permute.xlu0 %2620
        %2622 = vrot.lane.b32.xlu0 %v1178, 96
        %v2623 = vpop.permute.xlu0 %2622
        %2624 = vrot.lane.b32.xlu0 %v1183, 96
        %v2625 = vpop.permute.xlu0 %2624
        %2626 = vrot.lane.b32.xlu0 %v1186, 96
        %v2627 = vpop.permute.xlu0 %2626
        %2628 = vrot.lane.b32.xlu0 %v1191, 96
        %v2629 = vpop.permute.xlu0 %2628
        %2630 = vrot.lane.b32.xlu0 %v1194, 96
        %v2631 = vpop.permute.xlu0 %2630
        %2632 = vrot.lane.b32.xlu0 %v1199, 96
        %v2633 = vpop.permute.xlu0 %2632
        %2634 = vrot.lane.b32.xlu0 %v1202, 96
        %v2635 = vpop.permute.xlu0 %2634
        %2636 = vrot.lane.b32.xlu0 %v1207, 96
        %v2637 = vpop.permute.xlu0 %2636
        %2638 = vrot.lane.b32.xlu0 %v1210, 96
        %v2639 = vpop.permute.xlu0 %2638
        %2640 = vrot.lane.b32.xlu0 %v1215, 96
        %v2641 = vpop.permute.xlu0 %2640
        %2642 = vrot.lane.b32.xlu0 %v1218, 96
        %v2643 = vpop.permute.xlu0 %2642
        %2644 = vrot.lane.b32.xlu0 %v1223, 96
        %v2645 = vpop.permute.xlu0 %2644
        %2646 = vrot.lane.b32.xlu0 %v1226, 96
        %v2647 = vpop.permute.xlu0 %2646
        %2648 = vrot.lane.b32.xlu0 %v1231, 96
        %v2649 = vpop.permute.xlu0 %2648
        %2650 = vrot.lane.b32.xlu0 %v1234, 96
        %v2651 = vpop.permute.xlu0 %2650
        %2652 = vrot.lane.b32.xlu0 %v1239, 96
        %v2653 = vpop.permute.xlu0 %2652
        %2654 = vrot.lane.b32.xlu0 %v1242, 96
        %v2655 = vpop.permute.xlu0 %2654
        %2656 = vrot.lane.b32.xlu0 %v1247, 96
        %v2657 = vpop.permute.xlu0 %2656
        %2658 = vrot.lane.b32.xlu0 %v1250, 96
        %v2659 = vpop.permute.xlu0 %2658
        %2660 = vrot.lane.b32.xlu0 %v1255, 96
        %v2661 = vpop.permute.xlu0 %2660
        %2662 = vrot.lane.b32.xlu0 %v1258, 96
        %v2663 = vpop.permute.xlu0 %2662
        %2664 = vrot.lane.b32.xlu0 %v1263, 96
        %v2665 = vpop.permute.xlu0 %2664
        %2666 = vrot.lane.b32.xlu0 %v1266, 96
        %v2667 = vpop.permute.xlu0 %2666
        %2668 = vrot.lane.b32.xlu0 %v1271, 96
        %v2669 = vpop.permute.xlu0 %2668
        %2670 = vrot.lane.b32.xlu0 %v1274, 96
        %v2671 = vpop.permute.xlu0 %2670
        %v2704 = vmul.f32 %v2445, %v2609
        %v2705 = vmul.f32 %v2448, %v2611
        %v2706 = vmul.f32 %v2453, %v2613
        %v2707 = vmul.f32 %v2456, %v2615
        %v2708 = vmul.f32 %v2461, %v2617
        %v2709 = vmul.f32 %v2464, %v2619
        %v2710 = vmul.f32 %v2469, %v2621
        %v2711 = vmul.f32 %v2472, %v2623
        %v2712 = vmul.f32 %v2477, %v2625
        %v2713 = vmul.f32 %v2480, %v2627
        %v2714 = vmul.f32 %v2485, %v2629
        %v2715 = vmul.f32 %v2488, %v2631
        %v2716 = vmul.f32 %v2493, %v2633
        %v2717 = vmul.f32 %v2496, %v2635
        %v2718 = vmul.f32 %v2501, %v2637
        %v2719 = vmul.f32 %v2504, %v2639
        %v2720 = vmul.f32 %v2509, %v2641
        %v2721 = vmul.f32 %v2512, %v2643
        %v2722 = vmul.f32 %v2517, %v2645
        %v2723 = vmul.f32 %v2520, %v2647
        %v2724 = vmul.f32 %v2525, %v2649
        %v2725 = vmul.f32 %v2528, %v2651
        %v2726 = vmul.f32 %v2533, %v2653
        %v2727 = vmul.f32 %v2536, %v2655
        %v2728 = vmul.f32 %v2541, %v2657
        %v2729 = vmul.f32 %v2544, %v2659
        %v2730 = vmul.f32 %v2549, %v2661
        %v2731 = vmul.f32 %v2552, %v2663
        %v2732 = vmul.f32 %v2557, %v2665
        %v2733 = vmul.f32 %v2560, %v2667
        %v2734 = vmul.f32 %v2565, %v2669
        %v2735 = vmul.f32 %v2568, %v2671
        %v2736 = vsel %vm649, %v2704, 0.0
        %v2737 = vsel %vm649, %v2705, 0.0
        %v2738 = vadd.f32 %v2736, %v2737
        %v2739 = vsel %vm649, %v2706, 0.0
        %v2740 = vadd.f32 %v2738, %v2739
        %v2741 = vsel %vm649, %v2707, 0.0
        %v2742 = vadd.f32 %v2740, %v2741
        %v2743 = vrot.slane %v2742, 4
        %v2744 = vadd.f32 %v2742, %v2743
        %v2745 = vrot.slane %v2744, 2
        %v2746 = vadd.f32 %v2744, %v2745
        %v2747 = vrot.slane %v2746, 1
        %v2748 = vadd.f32 %v2746, %v2747
        %v2749 = vsel %vm649, %v2708, 0.0
        %v2750 = vsel %vm649, %v2709, 0.0
        %v2751 = vadd.f32 %v2749, %v2750
        %v2752 = vsel %vm649, %v2710, 0.0
        %v2753 = vadd.f32 %v2751, %v2752
        %v2754 = vsel %vm649, %v2711, 0.0
        %v2755 = vadd.f32 %v2753, %v2754
        %v2756 = vrot.slane %v2755, 4
        %v2757 = vadd.f32 %v2755, %v2756
        %v2758 = vrot.slane %v2757, 2
        %v2759 = vadd.f32 %v2757, %v2758
        %v2760 = vrot.slane %v2759, 1
        %v2761 = vadd.f32 %v2759, %v2760
        %v2762 = vsel %vm649, %v2712, 0.0
        %v2763 = vsel %vm649, %v2713, 0.0
        %v2764 = vadd.f32 %v2762, %v2763
        %v2765 = vsel %vm649, %v2714, 0.0
        %v2766 = vadd.f32 %v2764, %v2765
        %v2767 = vsel %vm649, %v2715, 0.0
        %v2768 = vadd.f32 %v2766, %v2767
        %v2769 = vrot.slane %v2768, 4
        %v2770 = vadd.f32 %v2768, %v2769
        %v2771 = vrot.slane %v2770, 2
        %v2772 = vadd.f32 %v2770, %v2771
        %v2773 = vrot.slane %v2772, 1
        %v2774 = vadd.f32 %v2772, %v2773
        %v2775 = vsel %vm649, %v2716, 0.0
        %v2776 = vsel %vm649, %v2717, 0.0
        %v2777 = vadd.f32 %v2775, %v2776
        %v2778 = vsel %vm649, %v2718, 0.0
        %v2779 = vadd.f32 %v2777, %v2778
        %v2780 = vsel %vm649, %v2719, 0.0
        %v2781 = vadd.f32 %v2779, %v2780
        %v2782 = vrot.slane %v2781, 4
        %v2783 = vadd.f32 %v2781, %v2782
        %v2784 = vrot.slane %v2783, 2
        %v2785 = vadd.f32 %v2783, %v2784
        %v2786 = vrot.slane %v2785, 1
        %v2787 = vadd.f32 %v2785, %v2786
        %v2788 = vsel %vm649, %v2720, 0.0
        %v2789 = vsel %vm649, %v2721, 0.0
        %v2790 = vadd.f32 %v2788, %v2789
        %v2791 = vsel %vm649, %v2722, 0.0
        %v2792 = vadd.f32 %v2790, %v2791
        %v2793 = vsel %vm649, %v2723, 0.0
        %v2794 = vadd.f32 %v2792, %v2793
        %v2795 = vrot.slane %v2794, 4
        %v2796 = vadd.f32 %v2794, %v2795
        %v2797 = vrot.slane %v2796, 2
        %v2798 = vadd.f32 %v2796, %v2797
        %v2799 = vrot.slane %v2798, 1
        %v2800 = vadd.f32 %v2798, %v2799
        %v2801 = vsel %vm649, %v2724, 0.0
        %v2802 = vsel %vm649, %v2725, 0.0
        %v2803 = vadd.f32 %v2801, %v2802
        %v2804 = vsel %vm649, %v2726, 0.0
        %v2805 = vadd.f32 %v2803, %v2804
        %v2806 = vsel %vm649, %v2727, 0.0
        %v2807 = vadd.f32 %v2805, %v2806
        %v2808 = vrot.slane %v2807, 4
        %v2809 = vadd.f32 %v2807, %v2808
        %v2810 = vrot.slane %v2809, 2
        %v2811 = vadd.f32 %v2809, %v2810
        %v2812 = vrot.slane %v2811, 1
        %v2813 = vadd.f32 %v2811, %v2812
        %v2814 = vsel %vm649, %v2728, 0.0
        %v2815 = vsel %vm649, %v2729, 0.0
        %v2816 = vadd.f32 %v2814, %v2815
        %v2817 = vsel %vm649, %v2730, 0.0
        %v2818 = vadd.f32 %v2816, %v2817
        %v2819 = vsel %vm649, %v2731, 0.0
        %v2820 = vadd.f32 %v2818, %v2819
        %v2821 = vrot.slane %v2820, 4
        %v2822 = vadd.f32 %v2820, %v2821
        %v2823 = vrot.slane %v2822, 2
        %v2824 = vadd.f32 %v2822, %v2823
        %v2825 = vrot.slane %v2824, 1
        %v2826 = vadd.f32 %v2824, %v2825
        %v2827 = vsel %vm649, %v2732, 0.0
        %v2828 = vsel %vm649, %v2733, 0.0
        %v2829 = vadd.f32 %v2827, %v2828
        %v2830 = vsel %vm649, %v2734, 0.0
        %v2831 = vadd.f32 %v2829, %v2830
        %v2832 = vsel %vm649, %v2735, 0.0
        %v2833 = vadd.f32 %v2831, %v2832
        %v2834 = vrot.slane %v2833, 4
        %v2835 = vadd.f32 %v2833, %v2834
        %v2836 = vrot.slane %v2835, 2
        %v2837 = vadd.f32 %v2835, %v2836
        %v2838 = vrot.slane %v2837, 1
        %v2839 = vadd.f32 %v2837, %v2838
        %v2848 = vsel %vm849, %v2761, %v2748
        %v2849 = vsel %vm852, %v2774, %v2848
        %v2850 = vsel %vm855, %v2787, %v2849
        %v2851 = vsel %vm858, %v2800, %v2850
        %v2852 = vsel %vm861, %v2813, %v2851
        %v2853 = vsel %vm864, %v2826, %v2852
        %v2854 = vsel %vm867, %v2839, %v2853
        %v2856 = vadd.f32 %v2575, %v2854
        %v2857 = vpack.c.bf16 %v2856, %v2856
        %v2858 = vld [vmem:[#allocation19] sm:$0xf]
        %v2859 = vld [vmem:[#allocation19 + $0x4] sm:$0xf]
        %v2860 = vld [vmem:[#allocation19 + $0x8] sm:$0xf]
        %v2861 = vld [vmem:[#allocation19 + $0xc] sm:$0xf]
        %v2862 = vld [vmem:[#allocation20] sm:$0x1]
        %v2864 = vlaneseq
        %v2865 = vshrl.u32 %v2864, 7
        %v2866 = vsub.s32 0, %v2865
        %v2867 = vrot.slane %v2862, %v2866
        %v2873 = vunpack.c.l.b16 %v2858
        %v2874 = vunpack.c.l.b16 %v2859
        %v2875 = vunpack.c.l.b16 %v2860
        %v2876 = vunpack.c.l.b16 %v2861
        %v2877 = vpack.c.b16 %v2874, %v2873
        %v2878 = vpack.c.b16 %v2876, %v2875
        %v2882 = vsel %vm649, %v2857, 0
        %2884 = vmatprep.subr.bf16.mxu0 0
        %2885 = vmatpush1.bf16.msra.mxu0 %v2877
        %2886 = vmatprep.subr.bf16.mxu0 0
        %2887 = vmatpush1.bf16.msra.mxu0 %v2878
        %2888 = vmatprep.subr.bf16.mxu0 0
        %2889 = vmatpush1.bf16.msra.mxu0 0
        %2890 = vmatprep.subr.bf16.mxu0 0
        %2891 = vmatpush1.bf16.msra.mxu0 0
        %2892 = vmatprep.subr.bf16.mxu0 0
        %2893 = vmatpush1.bf16.msra.mxu0 0
        %2894 = vmatprep.subr.bf16.mxu0 0
        %2895 = vmatpush1.bf16.msra.mxu0 0
        %2896 = vmatprep.subr.bf16.mxu0 0
        %2897 = vmatpush1.bf16.msra.mxu0 0
        %2898 = vmatprep.subr.bf16.mxu0 0
        %2899 = vmatpush1.bf16.msra.mxu0 0
        %2900 = vmatprep.subr.bf16.mxu0 0
        %2901 = vmatpush1.bf16.msra.mxu0 0
        %2902 = vmatprep.subr.bf16.mxu0 0
        %2903 = vmatpush1.bf16.msra.mxu0 0
        %2904 = vmatprep.subr.bf16.mxu0 0
        %2905 = vmatpush1.bf16.msra.mxu0 0
        %2906 = vmatprep.subr.bf16.mxu0 0
        %2907 = vmatpush1.bf16.msra.mxu0 0
        %2908 = vmatprep.subr.bf16.mxu0 0
        %2909 = vmatpush1.bf16.msra.mxu0 0
        %2910 = vmatprep.subr.bf16.mxu0 0
        %2911 = vmatpush1.bf16.msra.mxu0 0
        %2912 = vmatprep.subr.bf16.mxu0 0
        %2913 = vmatpush1.bf16.msra.mxu0 0
        %2914 = vmatprep.subr.bf16.mxu0 0
        %2915 = vmatpush1.bf16.msra.mxu0 0
        %2916 = vmatprep.mubr.bf16.mxu0 0
        %2917 = vmatmul.mubr.bf16.gmra.mrb[0].mxu0 %v2882
        %v2918 = vpop.f32.mrb[0].mxu0
        %v2919 = vadd.f32 %v2867, %v2918
        %v2920 = vpop.f32.mrb[0].mxu0
        %v2921 = vpop.f32.mrb[0].mxu0
        %v2922 = vpop.f32.mrb[0].mxu0
        %2923 = vdwg.mxu0
        %2924 = vst [vmem:[%s582] sm:$0xff] %v2919
        %s2925 = sand.u32 %s300, 1
        %s2926 = scalar_lea.sflag [#allocation4], %s2925
        %s2927 = sand.u32 %s300, 1
        %s2928 = smul.addr %s2927, 8
        %s2929 = scalar_lea.vmem [#allocation22], %s2928
        // Predicated region
        $region117: #{tpu_custom_call.1} parent=67 // pred_check
          %p2930 = pneg %p310
        $region118: #{tpu_custom_call.1} parent=67 // pred_check_branch
          %2932 = sbr.rel (%p2930) target = $region120
        $region119: #{tpu_custom_call.1} parent=67 // pred_region
          %s2934 = ssub.s32 128, 128
          %2935 = vsyncadd %s2926, %s2934
          %s2936 = smul.addr %s35, 128
          %s2937 = scalar_lea.hbm %s12, %s2936
          %s2939 = sshll.u32 %s2929, 4
          %s2940 = int_to_ptr.vmem [resolvable:$true] %s2939
          %2942 = dma.vmem_to_hbm [thread:$0]  %s2940, 128, %s2937, %s2926
        $region120: #{tpu_custom_call.1} parent=67 // pred_fallthru
          _
      $region68: #{tpu_custom_call.1} parent=5 // pred_fallthru
        _
      %p2943 = scmp.le.s32.totalorder 2, %s30
      // Predicated region
      $region121: #{tpu_custom_call.1} parent=5 // pred_check
        %p2944 = pneg %p2943
      $region122: #{tpu_custom_call.1} parent=5 // pred_check_branch
        %2946 = sbr.rel (%p2944) target = $region124
      $region123: #{tpu_custom_call.1} parent=5 // pred_region
        %s2947 = ssub.s32 %s30, 2
        // Predicated region
        $region125: #{tpu_custom_call.1} parent=123 // pred_check
          %p2948 = pneg %p316
        $region126: #{tpu_custom_call.1} parent=123 // pred_check_branch
          %2950 = sbr.rel (%p2948) target = $region128
        $region127: #{tpu_custom_call.1} parent=123 // pred_region
          %s2951 = sand.u32 %s301, 1
          %s2952 = scalar_lea.sflag [#allocation4], %s2951
          %s2953 = sand.u32 %s301, 1
          %s2954 = smul.addr %s2953, 8
          %s2955 = scalar_lea.vmem [#allocation22], %s2954
          %2956 = dma.done %s2952, 128
        $region128: #{tpu_custom_call.1} parent=123 // pred_fallthru
          _
      $region124: #{tpu_custom_call.1} parent=5 // pred_fallthru
        _
    $region6: #{tpu_custom_call.1} parent=1 // loop_footer
      %s34 = sadd.s32 1, %s30
    $region7: #{tpu_custom_call.1} parent=1 // loop_footer_branch
      %29 = sbr.rel target = $region3
    $region8: #{tpu_custom_call.1} parent=1 // loop_exit
      _
    %2957 = vsyncpa [#allocation3], 1
    %s2958 = scalar_lea.sflag [#allocation3], 1
    %2959 = vsyncpa %s2958, 1
    %2960 = vsyncpa [#allocation6], 1
    %2961 = vsyncpa [#allocation9], 1
    %2962 = vsyncpa [#allocation12], 1
    %2963 = vsyncpa [#allocation15], 1
    %2964 = vsyncpa [#allocation18], 1
    %2965 = vsyncpa [#allocation21], 1
    %2966 = vsyncpa [#allocation4], 1
    %s2967 = scalar_lea.sflag [#allocation4], 1
    %2968 = vsyncpa %s2967, 1

</llo_original>
